<compile_context>
chip_gen: v5e
topology: v5e:2x2
jax: 0.10.0
libtpu: 0.0.40
codegen_flags: <defaults>
</compile_context>

<pallas_src>
import jax
import jax.numpy as jnp
from jax import lax
from jax.experimental import pallas as pl
from jax.experimental.pallas import tpu as pltpu


# ----------------------------- Pallas kernels ------------------------------

def _conv_pool_relu_kernel(p_ref, w_ref, b_ref, o_ref):
    """Fused im2col-conv + bias + 2x2 maxpool + ReLU for one TM-column tile.

    p_ref: (4, K, TM)  im2col patches; axis 0 = the four 2x2-pool taps,
                       K = Cin*3*3 in torch (ci, kh, kw) order,
                       TM lane-columns index (b, ph, pw) pool pixels.
    w_ref: (C, K)      conv weight (torch weight.reshape(Cout, Cin*9)).
    b_ref: (C, 1)      conv bias column (broadcasts over lanes).
    o_ref: (C, TM)     pooled + ReLU'd activation (lane-dense store).
    """
    tm = o_ref.shape[1]
    # One MXU call for all four taps: lane-concat to (K, 4*TM), single dot,
    # then max over four 128-aligned static lane slices.
    p = jnp.concatenate([p_ref[0], p_ref[1], p_ref[2], p_ref[3]], axis=1)
    y = jnp.dot(w_ref[...], p, preferred_element_type=jnp.float32)
    m = jnp.maximum(jnp.maximum(y[:, 0 * tm:1 * tm], y[:, 1 * tm:2 * tm]),
                    jnp.maximum(y[:, 2 * tm:3 * tm], y[:, 3 * tm:4 * tm]))
    o_ref[...] = jnp.maximum(m + b_ref[...], 0.0).astype(o_ref.dtype)


def _mlp_kernel(x_ref, w1_ref, b1_ref, w2_ref, b2_ref, o_ref):
    """o = relu(x @ w1 + b1) @ w2 + b2  (fc1 + ReLU + fc2 fused)."""
    h = jnp.dot(x_ref[...], w1_ref[...], preferred_element_type=jnp.float32)
    h = jnp.maximum(h + b1_ref[...], 0.0)
    o = jnp.dot(h, w2_ref[...], preferred_element_type=jnp.float32)
    o_ref[...] = (o + b2_ref[...]).astype(o_ref.dtype)


# ------------------------------- wrappers -----------------------------------

def _round_up(x, m):
    return ((x + m - 1) // m) * m


def _choose_tm(rows, target=512):
    """Row-tile size: multiple of 128, <= target, >= 2 grid steps if possible
    (keeps both v7x TensorCores busy without shrinking tiles on v5e/v6e)."""
    full = _round_up(rows, 128)
    if full <= 128:
        return 128
    half = _round_up((full + 1) // 2, 128)
    return max(128, min(target, half))


def conv_pool_relu(patches, w, b):
    """patches: (4, K, R); w: (C, K); b: (C, 1) -> (C, R)."""
    _, K, R = patches.shape
    C = w.shape[0]
    tm = _choose_tm(R)
    r_pad = _round_up(R, tm)
    if r_pad != R:
        patches = jnp.pad(patches, ((0, 0), (0, 0), (0, r_pad - R)))
    out = pl.pallas_call(
        _conv_pool_relu_kernel,
        grid=(r_pad // tm,),
        in_specs=[
            pl.BlockSpec((4, K, tm), lambda i: (0, 0, i)),
            pl.BlockSpec((C, K), lambda i: (0, 0)),
            pl.BlockSpec((C, 1), lambda i: (0, 0)),
        ],
        out_specs=pl.BlockSpec((C, tm), lambda i: (0, i)),
        out_shape=jax.ShapeDtypeStruct((C, r_pad), jnp.float32),
        compiler_params=pltpu.CompilerParams(
            dimension_semantics=("parallel",)),
    )(patches, w, b)
    return out[:, :R]


def mlp(x, w1, b1, w2, b2):
    """x: (B, 800) -> (B, 10).  Whole batch as one VMEM-resident call."""
    B = x.shape[0]
    N = w2.shape[1]
    vmem = pl.BlockSpec(memory_space=pltpu.MemorySpace.VMEM)
    return pl.pallas_call(
        _mlp_kernel,
        in_specs=[vmem, vmem, vmem, vmem, vmem],
        out_specs=vmem,
        out_shape=jax.ShapeDtypeStruct((B, N), jnp.float32),
    )(x, w1, b1, w2, b2)


# ------------------------------- JAX glue ------------------------------------

def conv_tap_patches(x_cbhw, kh=3, kw=3):
    """x_cbhw: (C, B, H, W) -> (4, C*kh*kw, B*PH*PW) im2col patches grouped by
    the four 2x2-maxpool taps.  Feature order is (ci, kh, kw), matching torch
    Conv2d weight.reshape(Cout, Cin*kh*kw); columns index (b, ph, pw)."""
    C, B, H, W = x_cbhw.shape
    OH, OW = H - kh + 1, W - kw + 1
    PH, PW = OH // 2, OW // 2
    cols = jnp.stack([x_cbhw[:, :, di:di + OH, dj:dj + OW]
                      for di in range(kh) for dj in range(kw)], axis=1)
    # cols: (C, kh*kw, B, OH, OW)
    taps = jnp.stack([cols[:, :, :, i:2 * PH:2, j:2 * PW:2]
                      for i in range(2) for j in range(2)], axis=0)
    # taps: (4, C, kh*kw, B, PH, PW)
    # TODO(synk): at large batch, build these shifted windows inside the conv
    # kernel from the raw activation to cut the ~9x im2col HBM traffic.
    return taps.reshape(4, C * kh * kw, B * PH * PW), PH, PW


def prepare_params(params):
    """One-time weight re-layout so the forward pass has no transposes."""
    w1, b1, w2, b2, wf1, bf1, wf2, bf2 = params
    w1m = w1.reshape(16, 1 * 9)             # (C, K) = (16, 9)
    w2m = w2.reshape(32, 16 * 9)            # (32, 144)
    wf1m = wf1.T                            # (800, 128); input order (c,ph,pw)
    wf2m = wf2.T                            # (128, 10)
    return (w1m, b1.reshape(16, 1), w2m, b2.reshape(32, 1),
            wf1m, bf1.reshape(1, 128), wf2m, bf2.reshape(1, 10))


def cnn_forward(x, prep):
    """x: (B, 1, 28, 28) NCHW float32 -> (B, 10)."""
    w1m, b1m, w2m, b2m, wf1m, bf1m, wf2m, bf2m = prep
    B = x.shape[0]

    # conv1 block: 1 -> 16 channels, 28x28 conv -> pooled 13x13
    x_cbhw = x.transpose(1, 0, 2, 3)                        # (1, B, 28, 28)
    p1, ph1, pw1 = conv_tap_patches(x_cbhw)                 # (4, 9, B*169)
    a1 = conv_pool_relu(p1, w1m, b1m)                       # (16, B*169)

    # conv2 block: 16 -> 32 channels, 13x13 conv -> pooled 5x5
    a1 = a1.reshape(16, B, ph1, pw1)                        # CBHW
    p2, ph2, pw2 = conv_tap_patches(a1)                     # (4, 144, B*25)
    a2 = conv_pool_relu(p2, w2m, b2m)                       # (32, B*25)

    # flatten to torch order (c, ph, pw) per image, then fc1 + ReLU + fc2
    flat = (a2.reshape(32, B, ph2 * pw2)
              .transpose(1, 0, 2)
              .reshape(B, 32 * ph2 * pw2))                  # (B, 800)
    return mlp(flat, wf1m, bf1m, wf2m, bf2m)                # (B, 10)


# --------------------------- reference (pure JAX) ----------------------------

def reference_forward(x, params):
    w1, b1, w2, b2, wf1, bf1, wf2, bf2 = params
    dn = ("NCHW", "OIHW", "NCHW")
    hi = lax.Precision.HIGHEST
    y = lax.conv_general_dilated(x, w1, (1, 1), "VALID",
                                 dimension_numbers=dn, precision=hi)
    y = y + b1[None, :, None, None]
    y = lax.reduce_window(y, -jnp.inf, lax.max, (1, 1, 2, 2), (1, 1, 2, 2),
                          "VALID")
    y = jnp.maximum(y, 0.0)
    y = lax.conv_general_dilated(y, w2, (1, 1), "VALID",
                                 dimension_numbers=dn, precision=hi)
    y = y + b2[None, :, None, None]
    y = lax.reduce_window(y, -jnp.inf, lax.max, (1, 1, 2, 2), (1, 1, 2, 2),
                          "VALID")
    y = jnp.maximum(y, 0.0)
    flat = y.reshape(y.shape[0], -1)
    h = jnp.maximum(jnp.dot(flat, wf1.T, precision=hi) + bf1, 0.0)
    return jnp.dot(h, wf2.T, precision=hi) + bf2


# ------------------------------------ main -----------------------------------

def make_params(key):
    ks = jax.random.split(key, 8)
    w1 = jax.random.normal(ks[0], (16, 1, 3, 3), jnp.float32) * 0.2
    b1 = jax.random.normal(ks[1], (16,), jnp.float32) * 0.1
    w2 = jax.random.normal(ks[2], (32, 16, 3, 3), jnp.float32) * 0.05
    b2 = jax.random.normal(ks[3], (32,), jnp.float32) * 0.1
    wf1 = jax.random.normal(ks[4], (128, 32 * 5 * 5), jnp.float32) * 0.02
    bf1 = jax.random.normal(ks[5], (128,), jnp.float32) * 0.1
    wf2 = jax.random.normal(ks[6], (10, 128), jnp.float32) * 0.05
    bf2 = jax.random.normal(ks[7], (10,), jnp.float32) * 0.1
    return (w1, b1, w2, b2, wf1, bf1, wf2, bf2)


if __name__ == "__main__":
    key = jax.random.PRNGKey(0)
    pkey, xkey = jax.random.split(key)
    params = make_params(pkey)
    # Input implied by the module: 1-channel 28x28 (so fc1 sees 32*5*5 = 800).
    x = jax.random.normal(xkey, (2, 1, 28, 28), jnp.float32)

    prep = prepare_params(params)            # one-time weight re-layout
    fwd = jax.jit(cnn_forward)

    out = jax.block_until_ready(fwd(x, prep))
    ref = jax.block_until_ready(reference_forward(x, params))

    if out.shape != (2, 10):
        raise AssertionError(f"bad output shape {out.shape}")
    if not bool(jnp.allclose(out, ref, rtol=1e-4, atol=1e-4)):
        raise AssertionError("Pallas CNN output mismatch vs JAX reference")
    print("KERNEL_OK")
</pallas_src>

<mosaic_0001>
module attributes {stable_mosaic.version = 11 : i64} {
  func.func @_conv_pool_relu_kernel(%arg0: i32, %arg1: memref<4x9x256xf32, #tpu.memory_space<vmem>>, %arg2: memref<16x9xf32, #tpu.memory_space<vmem>>, %arg3: memref<16x1xf32, #tpu.memory_space<vmem>>, %arg4: memref<16x256xf32, #tpu.memory_space<vmem>>) attributes {dimension_semantics = [#tpu.dimension_semantics<parallel>], iteration_bounds = array<i64: 2>, scalar_prefetch = 0 : i64, scratch_operands = 0 : i64, tpu.core_type = #tpu.core_type<tc>, window_params = [{transform_indices = @transform_0, window_bounds = array<i64: 4, 9, 256>}, {pipeline_mode = #tpu.pipeline_mode<synchronous>, transform_indices = @transform_1, window_bounds = array<i64: 16, 9>}, {pipeline_mode = #tpu.pipeline_mode<synchronous>, transform_indices = @transform_2, window_bounds = array<i64: 16, 1>}, {transform_indices = @transform_3, window_bounds = array<i64: 16, 256>}]} {
    %c0 = arith.constant 0 : index
    %c0_0 = arith.constant 0 : index
    %c0_1 = arith.constant 0 : index
    %0 = vector.load %arg1[%c0, %c0_0, %c0_1] : memref<4x9x256xf32, #tpu.memory_space<vmem>>, vector<1x9x256xf32>
    %1 = vector.shape_cast %0 : vector<1x9x256xf32> to vector<9x256xf32>
    %c1 = arith.constant 1 : index
    %c0_2 = arith.constant 0 : index
    %c0_3 = arith.constant 0 : index
    %2 = vector.load %arg1[%c1, %c0_2, %c0_3] : memref<4x9x256xf32, #tpu.memory_space<vmem>>, vector<1x9x256xf32>
    %3 = vector.shape_cast %2 : vector<1x9x256xf32> to vector<9x256xf32>
    %c2 = arith.constant 2 : index
    %c0_4 = arith.constant 0 : index
    %c0_5 = arith.constant 0 : index
    %4 = vector.load %arg1[%c2, %c0_4, %c0_5] : memref<4x9x256xf32, #tpu.memory_space<vmem>>, vector<1x9x256xf32>
    %5 = vector.shape_cast %4 : vector<1x9x256xf32> to vector<9x256xf32>
    %c3 = arith.constant 3 : index
    %c0_6 = arith.constant 0 : index
    %c0_7 = arith.constant 0 : index
    %6 = vector.load %arg1[%c3, %c0_6, %c0_7] : memref<4x9x256xf32, #tpu.memory_space<vmem>>, vector<1x9x256xf32>
    %7 = vector.shape_cast %6 : vector<1x9x256xf32> to vector<9x256xf32>
    %8 = tpu.concatenate %1, %3, %5, %7 in 1 : vector<9x256xf32>, vector<9x256xf32>, vector<9x256xf32>, vector<9x256xf32> -> vector<9x1024xf32>
    %c0_8 = arith.constant 0 : index
    %c0_9 = arith.constant 0 : index
    %9 = vector.load %arg2[%c0_8, %c0_9] : memref<16x9xf32, #tpu.memory_space<vmem>>, vector<16x9xf32>
    %cst = arith.constant dense<0.000000e+00> : vector<16x1024xf32>
    %10 = tpu.matmul %9, %8, %cst {dimension_numbers = #tpu.dot_dimension_numbers<[1], [0], [0], [1], [0, 0, 1, 1], [], []>} : vector<16x9xf32>, vector<9x1024xf32>, vector<16x1024xf32> -> vector<16x1024xf32>
    %11 = vector.extract_strided_slice %10 {offsets = [0, 0], sizes = [16, 256], strides = [1, 1]} : vector<16x1024xf32> to vector<16x256xf32>
    %12 = vector.extract_strided_slice %10 {offsets = [0, 256], sizes = [16, 256], strides = [1, 1]} : vector<16x1024xf32> to vector<16x256xf32>
    %13 = arith.maximumf %11, %12 : vector<16x256xf32>
    %14 = vector.extract_strided_slice %10 {offsets = [0, 512], sizes = [16, 256], strides = [1, 1]} : vector<16x1024xf32> to vector<16x256xf32>
    %15 = vector.extract_strided_slice %10 {offsets = [0, 768], sizes = [16, 256], strides = [1, 1]} : vector<16x1024xf32> to vector<16x256xf32>
    %16 = arith.maximumf %14, %15 : vector<16x256xf32>
    %17 = arith.maximumf %13, %16 : vector<16x256xf32>
    %c0_10 = arith.constant 0 : index
    %c0_11 = arith.constant 0 : index
    %18 = vector.load %arg3[%c0_10, %c0_11] : memref<16x1xf32, #tpu.memory_space<vmem>>, vector<16x1xf32>
    %19 = vector.broadcast %18 : vector<16x1xf32> to vector<16x256xf32>
    %20 = arith.addf %17, %19 : vector<16x256xf32>
    %cst_12 = arith.constant 0.000000e+00 : f32
    %21 = vector.broadcast %cst_12 : f32 to vector<16x256xf32>
    %22 = arith.maximumf %20, %21 : vector<16x256xf32>
    %c0_13 = arith.constant 0 : index
    %c0_14 = arith.constant 0 : index
    %23 = vector.load %arg4[%c0_13, %c0_14] : memref<16x256xf32, #tpu.memory_space<vmem>>, vector<16x256xf32>
    tpu.vector_store %arg4[%c0_13, %c0_14], %22 {strides = array<i32>} : memref<16x256xf32, #tpu.memory_space<vmem>>, vector<16x256xf32>,
    return
  }
  func.func @transform_0(%arg0: i32) -> (i32, i32, i32) {
    %c0_i32 = arith.constant 0 : i32
    %c0_i32_0 = arith.constant 0 : i32
    %c0_i32_1 = arith.constant 0 : i32
    return %c0_i32, %c0_i32_0, %arg0 : i32, i32, i32
  }
  func.func @transform_1(%arg0: i32) -> (i32, i32) {
    %c0_i32 = arith.constant 0 : i32
    %c0_i32_0 = arith.constant 0 : i32
    %c0_i32_1 = arith.constant 0 : i32
    return %c0_i32, %c0_i32_0 : i32, i32
  }
  func.func @transform_2(%arg0: i32) -> (i32, i32) {
    %c0_i32 = arith.constant 0 : i32
    %c0_i32_0 = arith.constant 0 : i32
    %c0_i32_1 = arith.constant 0 : i32
    return %c0_i32, %c0_i32_0 : i32, i32
  }
  func.func @transform_3(%arg0: i32) -> (i32, i32) {
    %c0_i32 = arith.constant 0 : i32
    %c0_i32_0 = arith.constant 0 : i32
    return %c0_i32, %arg0 : i32, i32
  }
}

module attributes {stable_mosaic.version = 11 : i64} {
  func.func @_conv_pool_relu_kernel(%arg0: i32, %arg1: memref<4x144x128xf32, #tpu.memory_space<vmem>>, %arg2: memref<32x144xf32, #tpu.memory_space<vmem>>, %arg3: memref<32x1xf32, #tpu.memory_space<vmem>>, %arg4: memref<32x128xf32, #tpu.memory_space<vmem>>) attributes {dimension_semantics = [#tpu.dimension_semantics<parallel>], iteration_bounds = array<i64: 1>, scalar_prefetch = 0 : i64, scratch_operands = 0 : i64, tpu.core_type = #tpu.core_type<tc>, window_params = [{transform_indices = @transform_0, window_bounds = array<i64: 4, 144, 128>}, {pipeline_mode = #tpu.pipeline_mode<synchronous>, transform_indices = @transform_1, window_bounds = array<i64: 32, 144>}, {pipeline_mode = #tpu.pipeline_mode<synchronous>, transform_indices = @transform_2, window_bounds = array<i64: 32, 1>}, {transform_indices = @transform_3, window_bounds = array<i64: 32, 128>}]} {
    %c0 = arith.constant 0 : index
    %c0_0 = arith.constant 0 : index
    %c0_1 = arith.constant 0 : index
    %0 = vector.load %arg1[%c0, %c0_0, %c0_1] : memref<4x144x128xf32, #tpu.memory_space<vmem>>, vector<1x144x128xf32>
    %1 = vector.shape_cast %0 : vector<1x144x128xf32> to vector<144x128xf32>
    %c1 = arith.constant 1 : index
    %c0_2 = arith.constant 0 : index
    %c0_3 = arith.constant 0 : index
    %2 = vector.load %arg1[%c1, %c0_2, %c0_3] : memref<4x144x128xf32, #tpu.memory_space<vmem>>, vector<1x144x128xf32>
    %3 = vector.shape_cast %2 : vector<1x144x128xf32> to vector<144x128xf32>
    %c2 = arith.constant 2 : index
    %c0_4 = arith.constant 0 : index
    %c0_5 = arith.constant 0 : index
    %4 = vector.load %arg1[%c2, %c0_4, %c0_5] : memref<4x144x128xf32, #tpu.memory_space<vmem>>, vector<1x144x128xf32>
    %5 = vector.shape_cast %4 : vector<1x144x128xf32> to vector<144x128xf32>
    %c3 = arith.constant 3 : index
    %c0_6 = arith.constant 0 : index
    %c0_7 = arith.constant 0 : index
    %6 = vector.load %arg1[%c3, %c0_6, %c0_7] : memref<4x144x128xf32, #tpu.memory_space<vmem>>, vector<1x144x128xf32>
    %7 = vector.shape_cast %6 : vector<1x144x128xf32> to vector<144x128xf32>
    %8 = tpu.concatenate %1, %3, %5, %7 in 1 : vector<144x128xf32>, vector<144x128xf32>, vector<144x128xf32>, vector<144x128xf32> -> vector<144x512xf32>
    %c0_8 = arith.constant 0 : index
    %c0_9 = arith.constant 0 : index
    %9 = vector.load %arg2[%c0_8, %c0_9] : memref<32x144xf32, #tpu.memory_space<vmem>>, vector<32x144xf32>
    %cst = arith.constant dense<0.000000e+00> : vector<32x512xf32>
    %10 = tpu.matmul %9, %8, %cst {dimension_numbers = #tpu.dot_dimension_numbers<[1], [0], [0], [1], [0, 0, 1, 1], [], []>} : vector<32x144xf32>, vector<144x512xf32>, vector<32x512xf32> -> vector<32x512xf32>
    %11 = vector.extract_strided_slice %10 {offsets = [0, 0], sizes = [32, 128], strides = [1, 1]} : vector<32x512xf32> to vector<32x128xf32>
    %12 = vector.extract_strided_slice %10 {offsets = [0, 128], sizes = [32, 128], strides = [1, 1]} : vector<32x512xf32> to vector<32x128xf32>
    %13 = arith.maximumf %11, %12 : vector<32x128xf32>
    %14 = vector.extract_strided_slice %10 {offsets = [0, 256], sizes = [32, 128], strides = [1, 1]} : vector<32x512xf32> to vector<32x128xf32>
    %15 = vector.extract_strided_slice %10 {offsets = [0, 384], sizes = [32, 128], strides = [1, 1]} : vector<32x512xf32> to vector<32x128xf32>
    %16 = arith.maximumf %14, %15 : vector<32x128xf32>
    %17 = arith.maximumf %13, %16 : vector<32x128xf32>
    %c0_10 = arith.constant 0 : index
    %c0_11 = arith.constant 0 : index
    %18 = vector.load %arg3[%c0_10, %c0_11] : memref<32x1xf32, #tpu.memory_space<vmem>>, vector<32x1xf32>
    %19 = vector.broadcast %18 : vector<32x1xf32> to vector<32x128xf32>
    %20 = arith.addf %17, %19 : vector<32x128xf32>
    %cst_12 = arith.constant 0.000000e+00 : f32
    %21 = vector.broadcast %cst_12 : f32 to vector<32x128xf32>
    %22 = arith.maximumf %20, %21 : vector<32x128xf32>
    %c0_13 = arith.constant 0 : index
    %c0_14 = arith.constant 0 : index
    %23 = vector.load %arg4[%c0_13, %c0_14] : memref<32x128xf32, #tpu.memory_space<vmem>>, vector<32x128xf32>
    tpu.vector_store %arg4[%c0_13, %c0_14], %22 {strides = array<i32>} : memref<32x128xf32, #tpu.memory_space<vmem>>, vector<32x128xf32>,
    return
  }
  func.func @transform_0(%arg0: i32) -> (i32, i32, i32) {
    %c0_i32 = arith.constant 0 : i32
    %c0_i32_0 = arith.constant 0 : i32
    %c0_i32_1 = arith.constant 0 : i32
    return %c0_i32, %c0_i32_0, %arg0 : i32, i32, i32
  }
  func.func @transform_1(%arg0: i32) -> (i32, i32) {
    %c0_i32 = arith.constant 0 : i32
    %c0_i32_0 = arith.constant 0 : i32
    %c0_i32_1 = arith.constant 0 : i32
    return %c0_i32, %c0_i32_0 : i32, i32
  }
  func.func @transform_2(%arg0: i32) -> (i32, i32) {
    %c0_i32 = arith.constant 0 : i32
    %c0_i32_0 = arith.constant 0 : i32
    %c0_i32_1 = arith.constant 0 : i32
    return %c0_i32, %c0_i32_0 : i32, i32
  }
  func.func @transform_3(%arg0: i32) -> (i32, i32) {
    %c0_i32 = arith.constant 0 : i32
    %c0_i32_0 = arith.constant 0 : i32
    return %c0_i32, %arg0 : i32, i32
  }
}

module attributes {stable_mosaic.version = 11 : i64} {
  func.func @_mlp_kernel(%arg0: memref<2x800xf32, #tpu.memory_space<vmem>>, %arg1: memref<800x128xf32, #tpu.memory_space<vmem>>, %arg2: memref<1x128xf32, #tpu.memory_space<vmem>>, %arg3: memref<128x10xf32, #tpu.memory_space<vmem>>, %arg4: memref<1x10xf32, #tpu.memory_space<vmem>>, %arg5: memref<2x10xf32, #tpu.memory_space<vmem>>) attributes {dimension_semantics = [], scalar_prefetch = 0 : i64, scratch_operands = 0 : i64, tpu.core_type = #tpu.core_type<tc>} {
    %c0 = arith.constant 0 : index
    %c0_0 = arith.constant 0 : index
    %0 = vector.load %arg0[%c0, %c0_0] : memref<2x800xf32, #tpu.memory_space<vmem>>, vector<2x800xf32>
    %c0_1 = arith.constant 0 : index
    %c0_2 = arith.constant 0 : index
    %1 = vector.load %arg1[%c0_1, %c0_2] : memref<800x128xf32, #tpu.memory_space<vmem>>, vector<800x128xf32>
    %cst = arith.constant dense<0.000000e+00> : vector<2x128xf32>
    %2 = tpu.matmul %0, %1, %cst {dimension_numbers = #tpu.dot_dimension_numbers<[1], [0], [0], [1], [0, 0, 1, 1], [], []>} : vector<2x800xf32>, vector<800x128xf32>, vector<2x128xf32> -> vector<2x128xf32>
    %c0_3 = arith.constant 0 : index
    %c0_4 = arith.constant 0 : index
    %3 = vector.load %arg2[%c0_3, %c0_4] : memref<1x128xf32, #tpu.memory_space<vmem>>, vector<1x128xf32>
    %4 = vector.broadcast %3 : vector<1x128xf32> to vector<2x128xf32>
    %5 = arith.addf %2, %4 : vector<2x128xf32>
    %cst_5 = arith.constant 0.000000e+00 : f32
    %6 = vector.broadcast %cst_5 : f32 to vector<2x128xf32>
    %7 = arith.maximumf %5, %6 : vector<2x128xf32>
    %c0_6 = arith.constant 0 : index
    %c0_7 = arith.constant 0 : index
    %8 = vector.load %arg3[%c0_6, %c0_7] : memref<128x10xf32, #tpu.memory_space<vmem>>, vector<128x10xf32>
    %cst_8 = arith.constant dense<0.000000e+00> : vector<2x10xf32>
    %9 = tpu.matmul %7, %8, %cst_8 {dimension_numbers = #tpu.dot_dimension_numbers<[1], [0], [0], [1], [0, 0, 1, 1], [], []>} : vector<2x128xf32>, vector<128x10xf32>, vector<2x10xf32> -> vector<2x10xf32>
    %c0_9 = arith.constant 0 : index
    %c0_10 = arith.constant 0 : index
    %10 = vector.load %arg4[%c0_9, %c0_10] : memref<1x10xf32, #tpu.memory_space<vmem>>, vector<1x10xf32>
    %11 = vector.broadcast %10 : vector<1x10xf32> to vector<2x10xf32>
    %12 = arith.addf %9, %11 : vector<2x10xf32>
    %c0_11 = arith.constant 0 : index
    %c0_12 = arith.constant 0 : index
    %13 = vector.load %arg5[%c0_11, %c0_12] : memref<2x10xf32, #tpu.memory_space<vmem>>, vector<2x10xf32>
    tpu.vector_store %arg5[%c0_11, %c0_12], %12 {strides = array<i32>} : memref<2x10xf32, #tpu.memory_space<vmem>>, vector<2x10xf32>,
    return
  }
}

</mosaic_0001>

<llo_original>
// kernel: cnn_forward.3
$region0: #{cnn_forward.3}
  #allocation0 [shape = 'u32[]', space=smem, size = 0x4, offset = 0x4, fixed_abs, tag = 'smem constant byte address 0x4 - core index']
  #allocation1 [shape = 'u32[72,128]{1,0:T(1,128)}', space=vmem, size = 0x9000, scoped, tag = 'internal scratch']
  %s0 = inlined_call_operand.vmem [shape: f32[4,9,512], index: 0, kind: input, shape index: {}]
  %s1 = inlined_call_operand.vmem [shape: f32[16,9], index: 1, kind: input, shape index: {}]
  %s2 = inlined_call_operand.vmem [shape: f32[16,1], index: 2, kind: input, shape index: {}]
  %s3 = inlined_call_operand.vmem [shape: f32[16,512], index: 3, kind: output, shape index: {}]
  %s4 = sld [smem:[#allocation0]]
  $region87: #{cnn_forward.3} parent=0
    _
  %s6 = ssub.s32 1, %s4
  %s7 = scalar_select 0, %s6, %s4
  $region1: #{cnn_forward.3} parent=0
    #allocation2 [shape = 'u8[131072]{0}', space=vmem, size = 0x20000, scoped, tag = 'input window, operand 0']
    #allocation3 [shape = 'u8[32768]{0}', space=vmem, size = 0x8000, scoped, tag = 'output window, operand 0']
    loop: start=0, step=1, limit=4
    $region2: #{cnn_forward.3} parent=1 // loop_pre_header
      _
    $region3: #{cnn_forward.3} parent=1 // loop_header
      %s9 = sphi 0, %s13
      %p10 = scmp.ge.s32.totalorder %s9, 4
      %s19 = sphi 0, %s21
      %s22 = sphi 0, %s19
      %s23 = sphi 0, %s22
      %s39 = sphi 0, %s23
      %s43 = sphi 0, %s43
      %s45 = sphi 0, %s43
      %s46 = sphi 0, %s45
      %s60 = sphi 0, %s46
      %s64 = sphi 0, %s64
      %s66 = sphi 0, %s64
      %s67 = sphi 0, %s66
      %s81 = sphi 0, %s67
      %s87 = sphi 0, %s89
      %s90 = sphi 0, %s87
      %s91 = sphi 0, %s90
      %s107 = sphi 0, %s91
    $region4: #{cnn_forward.3} parent=1 // loop_header_branch
      %12 = sbr.rel (%p10) target = $region8
    $region5: #{cnn_forward.3} parent=1 // loop_body
      %s14 = ssub.s32 %s9, 1
      %s15 = ssub.s32 %s9, 2
      %s16 = sadd.s32 %s9, 1
      %s17 = ssub.s32 %s9, %s16
      %p18 = scmp.eq.s32.totalorder %s17, 0
      %s20 = sadd.s32 %s19, 1
      %s21 = scalar_select %p18, %s19, %s20
      %p24 = pneg %p18
      %p25 = scmp.eq.s32.totalorder %s9, 1
      %p26 = por %p24, %p25
      %p27 = scmp.ne.s32.totalorder %s19, %s22
      %p28 = scmp.eq.s32.totalorder %s9, 0
      %p29 = por %p27, %p28
      %p30 = scmp.ne.s32.totalorder %s19, %s22
      %p31 = scmp.eq.s32.totalorder %s14, 1
      %p32 = por %p30, %p31
      %p33 = scmp.ne.s32.totalorder %s22, %s23
      %p34 = scmp.eq.s32.totalorder %s14, 0
      %p35 = por %p33, %p34
      %p36 = scmp.ne.s32.totalorder %s22, %s23
      %p37 = scmp.eq.s32.totalorder %s15, 1
      %p38 = por %p36, %p37
      %p40 = scmp.ne.s32.totalorder %s23, %s39
      %p41 = scmp.eq.s32.totalorder %s15, 0
      %p42 = por %p40, %p41
      %s44 = sadd.s32 %s43, 1
      %p47 = scmp.eq.s32.totalorder %s9, 1
      %p48 = scmp.ne.s32.totalorder %s43, %s45
      %p49 = scmp.eq.s32.totalorder %s9, 0
      %p50 = por %p48, %p49
      %p51 = scmp.ne.s32.totalorder %s43, %s45
      %p52 = scmp.eq.s32.totalorder %s14, 1
      %p53 = por %p51, %p52
      %p54 = scmp.ne.s32.totalorder %s45, %s46
      %p55 = scmp.eq.s32.totalorder %s14, 0
      %p56 = por %p54, %p55
      %p57 = scmp.ne.s32.totalorder %s45, %s46
      %p58 = scmp.eq.s32.totalorder %s15, 1
      %p59 = por %p57, %p58
      %p61 = scmp.ne.s32.totalorder %s46, %s60
      %p62 = scmp.eq.s32.totalorder %s15, 0
      %p63 = por %p61, %p62
      %s65 = sadd.s32 %s64, 1
      %p68 = scmp.eq.s32.totalorder %s9, 1
      %p69 = scmp.ne.s32.totalorder %s64, %s66
      %p70 = scmp.eq.s32.totalorder %s9, 0
      %p71 = por %p69, %p70
      %p72 = scmp.ne.s32.totalorder %s64, %s66
      %p73 = scmp.eq.s32.totalorder %s14, 1
      %p74 = por %p72, %p73
      %p75 = scmp.ne.s32.totalorder %s66, %s67
      %p76 = scmp.eq.s32.totalorder %s14, 0
      %p77 = por %p75, %p76
      %p78 = scmp.ne.s32.totalorder %s66, %s67
      %p79 = scmp.eq.s32.totalorder %s15, 1
      %p80 = por %p78, %p79
      %p82 = scmp.ne.s32.totalorder %s67, %s81
      %p83 = scmp.eq.s32.totalorder %s15, 0
      %p84 = por %p82, %p83
      %s85 = ssub.s32 %s9, %s16
      %p86 = scmp.eq.s32.totalorder %s85, 0
      %s88 = sadd.s32 %s87, 1
      %s89 = scalar_select %p86, %s87, %s88
      %p92 = pneg %p86
      %p93 = scmp.eq.s32.totalorder %s9, 1
      %p94 = por %p92, %p93
      %p95 = scmp.ne.s32.totalorder %s87, %s90
      %p96 = scmp.eq.s32.totalorder %s9, 0
      %p97 = por %p95, %p96
      %p98 = scmp.ne.s32.totalorder %s87, %s90
      %p99 = scmp.eq.s32.totalorder %s14, 1
      %p100 = por %p98, %p99
      %p101 = scmp.ne.s32.totalorder %s90, %s91
      %p102 = scmp.eq.s32.totalorder %s14, 0
      %p103 = por %p101, %p102
      %p104 = scmp.ne.s32.totalorder %s90, %s91
      %p105 = scmp.eq.s32.totalorder %s15, 1
      %p106 = por %p104, %p105
      %p108 = scmp.ne.s32.totalorder %s91, %s107
      %p109 = scmp.eq.s32.totalorder %s15, 0
      %p110 = por %p108, %p109
      %p111 = scmp.le.s32.totalorder 1, %s9
      %p112 = scmp.lt.s32.totalorder %s9, 3
      %p113 = pnand %p111, %p112
      %p114 = pneg %p113
      // Predicated region
      $region9: #{cnn_forward.3} parent=5 // pred_check
        _
      $region10: #{cnn_forward.3} parent=5 // pred_check_branch
        %116 = sbr.rel (%p113) target = $region12
      $region11: #{cnn_forward.3} parent=5 // pred_region
        %s117 = ssub.s32 %s9, 1
        // Predicated region
        $region13: #{cnn_forward.3} parent=11 // pred_check
          %p118 = pneg %p56
        $region14: #{cnn_forward.3} parent=11 // pred_check_branch
          %120 = sbr.rel (%p118) target = $region16
        $region15: #{cnn_forward.3} parent=11 // pred_region
          _
        $region16: #{cnn_forward.3} parent=11 // pred_fallthru
          _
        // Predicated region
        $region17: #{cnn_forward.3} parent=11 // pred_check
          %p121 = pneg %p77
        $region18: #{cnn_forward.3} parent=11 // pred_check_branch
          %123 = sbr.rel (%p121) target = $region20
        $region19: #{cnn_forward.3} parent=11 // pred_region
          _
        $region20: #{cnn_forward.3} parent=11 // pred_fallthru
          _
      $region12: #{cnn_forward.3} parent=5 // pred_fallthru
        _
      %p124 = scmp.lt.s32.totalorder %s9, 2
      // Predicated region
      $region21: #{cnn_forward.3} parent=5 // pred_check
        %p125 = pneg %p124
      $region22: #{cnn_forward.3} parent=5 // pred_check_branch
        %127 = sbr.rel (%p125) target = $region24
      $region23: #{cnn_forward.3} parent=5 // pred_region
        // Predicated region
        $region25: #{cnn_forward.3} parent=23 // pred_check
          %p128 = pneg %p29
        $region26: #{cnn_forward.3} parent=23 // pred_check_branch
          %130 = sbr.rel (%p128) target = $region28
        $region27: #{cnn_forward.3} parent=23 // pred_region
          %s131 = sand.u32 %s19, 1
          %s132 = sand.u32 %s19, 1
          %s133 = smul.addr %s132, 128
          %s134 = scalar_lea.vmem [#allocation2], %s133
          %s135 = smul.u32 2, %s9
          %s136 = smul.addr %s135, 8
          %s137 = scalar_lea.vmem %s0, %s136
          // Predicated region
          $region29: #{cnn_forward.3} parent=27 // pred_check
            _
          $region30: #{cnn_forward.3} parent=27 // pred_check_branch
            %139 = sbr.rel (0) target = $region32
          $region31: #{cnn_forward.3} parent=27 // pred_region
            // Predicated region
            $region33: #{cnn_forward.3} parent=31 // pred_check
              _
            $region34: #{cnn_forward.3} parent=31 // pred_check_branch
              %141 = sbr.rel (0) target = $region36
            $region35: #{cnn_forward.3} parent=31 // pred_region
              loop: start=0, step=1, limit=1
              $region37: #{cnn_forward.3} parent=35 // loop_pre_header
                _
              $region38: #{cnn_forward.3} parent=35 // loop_header
                %s143 = sphi 0, %s147
                %p144 = scmp.ge.s32.totalorder %s143, 1
                %s148 = sphi %s137, %s137
                %s149 = sphi %s134, %s134
              $region39: #{cnn_forward.3} parent=35 // loop_header_branch
                %146 = sbr.rel (%p144) target = $region43
              $region40: #{cnn_forward.3} parent=35 // loop_body
                %v150 = vld [vmem:[%s148] sm:$0xff]
                %151 = vst [vmem:[%s149] sm:$0xff] %v150
                %v152 = vld [vmem:[%s148 + $0x8] sm:$0xff]
                %153 = vst [vmem:[%s149 + $0x8] sm:$0xff] %v152
                %v154 = vld [vmem:[%s148 + $0x20] sm:$0xff]
                %155 = vst [vmem:[%s149 + $0x10] sm:$0xff] %v154
                %v156 = vld [vmem:[%s148 + $0x28] sm:$0xff]
                %157 = vst [vmem:[%s149 + $0x18] sm:$0xff] %v156
                %v158 = vld [vmem:[%s148 + $0x40] sm:$0xff]
                %159 = vst [vmem:[%s149 + $0x20] sm:$0xff] %v158
                %v160 = vld [vmem:[%s148 + $0x48] sm:$0xff]
                %161 = vst [vmem:[%s149 + $0x28] sm:$0xff] %v160
                %v162 = vld [vmem:[%s148 + $0x60] sm:$0xff]
                %163 = vst [vmem:[%s149 + $0x30] sm:$0xff] %v162
                %v164 = vld [vmem:[%s148 + $0x68] sm:$0xff]
                %165 = vst [vmem:[%s149 + $0x38] sm:$0xff] %v164
                %v166 = vld [vmem:[%s148 + $0x80] sm:$0xff]
                %167 = vst [vmem:[%s149 + $0x40] sm:$0xff] %v166
                %v168 = vld [vmem:[%s148 + $0x88] sm:$0xff]
                %169 = vst [vmem:[%s149 + $0x48] sm:$0xff] %v168
                %v170 = vld [vmem:[%s148 + $0xa0] sm:$0xff]
                %171 = vst [vmem:[%s149 + $0x50] sm:$0xff] %v170
                %v172 = vld [vmem:[%s148 + $0xa8] sm:$0xff]
                %173 = vst [vmem:[%s149 + $0x58] sm:$0xff] %v172
                %v174 = vld [vmem:[%s148 + $0xc0] sm:$0xff]
                %175 = vst [vmem:[%s149 + $0x60] sm:$0xff] %v174
                %v176 = vld [vmem:[%s148 + $0xc8] sm:$0xff]
                %177 = vst [vmem:[%s149 + $0x68] sm:$0xff] %v176
                %v178 = vld [vmem:[%s148 + $0xe0] sm:$0xff]
                %179 = vst [vmem:[%s149 + $0x70] sm:$0xff] %v178
                %v180 = vld [vmem:[%s148 + $0xe8] sm:$0xff]
                %181 = vst [vmem:[%s149 + $0x78] sm:$0xff] %v180
              $region41: #{cnn_forward.3} parent=35 // loop_footer
                %s147 = sadd.s32 1, %s143
              $region42: #{cnn_forward.3} parent=35 // loop_footer_branch
                %142 = sbr.rel target = $region38
              $region43: #{cnn_forward.3} parent=35 // loop_exit
                _
            $region36: #{cnn_forward.3} parent=31 // pred_fallthru
              _
            // Predicated region
            $region44: #{cnn_forward.3} parent=31 // pred_check
              _
            $region45: #{cnn_forward.3} parent=31 // pred_check_branch
              %183 = sbr.rel target = $region47
            $region46: #{cnn_forward.3} parent=31 // pred_region
              _
            $region47: #{cnn_forward.3} parent=31 // pred_fallthru
              _
          $region32: #{cnn_forward.3} parent=27 // pred_fallthru
            _
          %184 = vnop
        $region28: #{cnn_forward.3} parent=23 // pred_fallthru
          _
      $region24: #{cnn_forward.3} parent=5 // pred_fallthru
        _
      %p185 = scmp.le.s32.totalorder 1, %s9
      %p186 = scmp.lt.s32.totalorder %s9, 3
      %p187 = pnand %p185, %p186
      %p188 = pneg %p187
      // Predicated region
      $region48: #{cnn_forward.3} parent=5 // pred_check
        _
      $region49: #{cnn_forward.3} parent=5 // pred_check_branch
        %190 = sbr.rel (%p187) target = $region51
      $region50: #{cnn_forward.3} parent=5 // pred_region
        %s191 = ssub.s32 %s9, 1
        %s192 = sand.u32 %s22, 1
        %s193 = sand.u32 %s22, 1
        %s194 = smul.addr %s193, 128
        %s195 = scalar_lea.vmem [#allocation2], %s194
        // Predicated region
        $region52: #{cnn_forward.3} parent=50 // pred_check
          %p196 = pneg %p35
        $region53: #{cnn_forward.3} parent=50 // pred_check_branch
          %198 = sbr.rel (%p196) target = $region55
        $region54: #{cnn_forward.3} parent=50 // pred_region
          _
        $region55: #{cnn_forward.3} parent=50 // pred_fallthru
          _
        %s199 = sand.u32 %s22, 1
        %s200 = sand.u32 %s22, 1
        %s201 = smul.addr %s200, 128
        %s202 = scalar_lea.vmem [#allocation2], %s201
        %p203 = pneg %p35
        %p204 = pneg %p32
        %p205 = pneg %p56
        %p206 = pneg %p53
        %p207 = pneg %p77
        %p208 = pneg %p74
        %p209 = pneg %p103
        %p210 = pneg %p100
        %s211 = sand.u32 %s90, 1
        %s212 = sand.u32 %s90, 1
        %s213 = smul.addr %s212, 32
        %s214 = scalar_lea.vmem [#allocation3], %s213
        %s215 = smul.u32 2, %s14
        %s216 = smul.u32 2, %s14
        %v217 = vld [vmem:[%s195] sm:$0xff]
        %v218 = vld [vmem:[%s195 + $0x8] sm:$0xff]
        %v219 = vld [vmem:[%s195 + $0x10] sm:$0x1]
        %v220 = vld [vmem:[%s195 + $0x18] sm:$0x1]
        %s221 = scalar_lea.vmem %s195, 32 [#allocation2]
        %v222 = vld [vmem:[%s221] sm:$0xff]
        %v223 = vld [vmem:[%s221 + $0x8] sm:$0xff]
        %v224 = vld [vmem:[%s221 + $0x10] sm:$0x1]
        %v225 = vld [vmem:[%s221 + $0x18] sm:$0x1]
        %s226 = scalar_lea.vmem %s195, 64 [#allocation2]
        %v227 = vld [vmem:[%s226] sm:$0xff]
        %v228 = vld [vmem:[%s226 + $0x8] sm:$0xff]
        %v229 = vld [vmem:[%s226 + $0x10] sm:$0x1]
        %v230 = vld [vmem:[%s226 + $0x18] sm:$0x1]
        %s231 = scalar_lea.vmem %s195, 96 [#allocation2]
        %v232 = vld [vmem:[%s231] sm:$0xff]
        %v233 = vld [vmem:[%s231 + $0x8] sm:$0xff]
        %v234 = vld [vmem:[%s231 + $0x10] sm:$0x1]
        %v235 = vld [vmem:[%s231 + $0x18] sm:$0x1]
        %v236 = vld [vmem:[%s1] sm:$0xff]
        %v237 = vld [vmem:[%s1 + $0x8] sm:$0xff]
        %vm238 = vcmask 72704
        %v240 = vsel %vm238, %v236, 0
        %v243 = vsel %vm238, %v237, 0
        %vm245 = vcmask 1040384
        %v247 = vsel %vm245, %v219, 0
        %v250 = vsel %vm245, %v220, 0
        %v253 = vsel %vm245, %v224, 0
        %v256 = vsel %vm245, %v225, 0
        %v259 = vsel %vm245, %v229, 0
        %v262 = vsel %vm245, %v230, 0
        %v265 = vsel %vm245, %v234, 0
        %v268 = vsel %vm245, %v235, 0
        %270 = vmatpush.msra.mxu0 0.0
        %271 = vmatpush.msra.mxu0 0.0
        %272 = vmatpush.msra.mxu0 0.0
        %273 = vmatpush.msra.mxu0 0.0
        %274 = vmatpush.msra.mxu0 0.0
        %275 = vmatpush.msra.mxu0 0.0
        %276 = vmatpush.msra.mxu0 0.0
        %277 = vmatpush.msra.mxu0 0.0
        %278 = vmatpush.msra.mxu0 0.0
        %279 = vmatpush.msra.mxu0 0.0
        %280 = vmatpush.msra.mxu0 0.0
        %281 = vmatpush.msra.mxu0 0.0
        %282 = vmatpush.msra.mxu0 0.0
        %283 = vmatpush.msra.mxu0 0.0
        %284 = vmatpush.msra.mxu0 %v247
        %285 = vmatpush.msra.mxu0 %v217
        %286 = vmatmul.f32.gmra.mxu0 %v240
        %v287 = vpop.f32.mrf.mxu0
        %v288 = vadd.f32 0.0, %v287
        %289 = vmatmul.f32.gmra.mxu0 %v243
        %v290 = vpop.f32.mrf.mxu0
        %v291 = vadd.f32 0.0, %v290
        %292 = vdwg.mxu0
        %293 = vmatpush.msra.mxu0 0.0
        %294 = vmatpush.msra.mxu0 0.0
        %295 = vmatpush.msra.mxu0 0.0
        %296 = vmatpush.msra.mxu0 0.0
        %297 = vmatpush.msra.mxu0 0.0
        %298 = vmatpush.msra.mxu0 0.0
        %299 = vmatpush.msra.mxu0 0.0
        %300 = vmatpush.msra.mxu0 0.0
        %301 = vmatpush.msra.mxu0 0.0
        %302 = vmatpush.msra.mxu0 0.0
        %303 = vmatpush.msra.mxu0 0.0
        %304 = vmatpush.msra.mxu0 0.0
        %305 = vmatpush.msra.mxu0 0.0
        %306 = vmatpush.msra.mxu0 0.0
        %307 = vmatpush.msra.mxu0 %v250
        %308 = vmatpush.msra.mxu0 %v218
        %309 = vmatmul.f32.gmra.mxu0 %v240
        %v310 = vpop.f32.mrf.mxu0
        %v311 = vadd.f32 0.0, %v310
        %312 = vmatmul.f32.gmra.mxu0 %v243
        %v313 = vpop.f32.mrf.mxu0
        %v314 = vadd.f32 0.0, %v313
        %315 = vdwg.mxu0
        %316 = vmatpush.msra.mxu0 0.0
        %317 = vmatpush.msra.mxu0 0.0
        %318 = vmatpush.msra.mxu0 0.0
        %319 = vmatpush.msra.mxu0 0.0
        %320 = vmatpush.msra.mxu0 0.0
        %321 = vmatpush.msra.mxu0 0.0
        %322 = vmatpush.msra.mxu0 0.0
        %323 = vmatpush.msra.mxu0 0.0
        %324 = vmatpush.msra.mxu0 0.0
        %325 = vmatpush.msra.mxu0 0.0
        %326 = vmatpush.msra.mxu0 0.0
        %327 = vmatpush.msra.mxu0 0.0
        %328 = vmatpush.msra.mxu0 0.0
        %329 = vmatpush.msra.mxu0 0.0
        %330 = vmatpush.msra.mxu0 %v253
        %331 = vmatpush.msra.mxu0 %v222
        %332 = vmatmul.f32.gmra.mxu0 %v240
        %v333 = vpop.f32.mrf.mxu0
        %v334 = vadd.f32 0.0, %v333
        %335 = vmatmul.f32.gmra.mxu0 %v243
        %v336 = vpop.f32.mrf.mxu0
        %v337 = vadd.f32 0.0, %v336
        %338 = vdwg.mxu0
        %339 = vmatpush.msra.mxu0 0.0
        %340 = vmatpush.msra.mxu0 0.0
        %341 = vmatpush.msra.mxu0 0.0
        %342 = vmatpush.msra.mxu0 0.0
        %343 = vmatpush.msra.mxu0 0.0
        %344 = vmatpush.msra.mxu0 0.0
        %345 = vmatpush.msra.mxu0 0.0
        %346 = vmatpush.msra.mxu0 0.0
        %347 = vmatpush.msra.mxu0 0.0
        %348 = vmatpush.msra.mxu0 0.0
        %349 = vmatpush.msra.mxu0 0.0
        %350 = vmatpush.msra.mxu0 0.0
        %351 = vmatpush.msra.mxu0 0.0
        %352 = vmatpush.msra.mxu0 0.0
        %353 = vmatpush.msra.mxu0 %v256
        %354 = vmatpush.msra.mxu0 %v223
        %355 = vmatmul.f32.gmra.mxu0 %v240
        %v356 = vpop.f32.mrf.mxu0
        %v357 = vadd.f32 0.0, %v356
        %358 = vmatmul.f32.gmra.mxu0 %v243
        %v359 = vpop.f32.mrf.mxu0
        %v360 = vadd.f32 0.0, %v359
        %361 = vdwg.mxu0
        %362 = vmatpush.msra.mxu0 0.0
        %363 = vmatpush.msra.mxu0 0.0
        %364 = vmatpush.msra.mxu0 0.0
        %365 = vmatpush.msra.mxu0 0.0
        %366 = vmatpush.msra.mxu0 0.0
        %367 = vmatpush.msra.mxu0 0.0
        %368 = vmatpush.msra.mxu0 0.0
        %369 = vmatpush.msra.mxu0 0.0
        %370 = vmatpush.msra.mxu0 0.0
        %371 = vmatpush.msra.mxu0 0.0
        %372 = vmatpush.msra.mxu0 0.0
        %373 = vmatpush.msra.mxu0 0.0
        %374 = vmatpush.msra.mxu0 0.0
        %375 = vmatpush.msra.mxu0 0.0
        %376 = vmatpush.msra.mxu0 %v259
        %377 = vmatpush.msra.mxu0 %v227
        %378 = vmatmul.f32.gmra.mxu0 %v240
        %v379 = vpop.f32.mrf.mxu0
        %v380 = vadd.f32 0.0, %v379
        %381 = vmatmul.f32.gmra.mxu0 %v243
        %v382 = vpop.f32.mrf.mxu0
        %v383 = vadd.f32 0.0, %v382
        %384 = vdwg.mxu0
        %385 = vmatpush.msra.mxu0 0.0
        %386 = vmatpush.msra.mxu0 0.0
        %387 = vmatpush.msra.mxu0 0.0
        %388 = vmatpush.msra.mxu0 0.0
        %389 = vmatpush.msra.mxu0 0.0
        %390 = vmatpush.msra.mxu0 0.0
        %391 = vmatpush.msra.mxu0 0.0
        %392 = vmatpush.msra.mxu0 0.0
        %393 = vmatpush.msra.mxu0 0.0
        %394 = vmatpush.msra.mxu0 0.0
        %395 = vmatpush.msra.mxu0 0.0
        %396 = vmatpush.msra.mxu0 0.0
        %397 = vmatpush.msra.mxu0 0.0
        %398 = vmatpush.msra.mxu0 0.0
        %399 = vmatpush.msra.mxu0 %v262
        %400 = vmatpush.msra.mxu0 %v228
        %401 = vmatmul.f32.gmra.mxu0 %v240
        %v402 = vpop.f32.mrf.mxu0
        %v403 = vadd.f32 0.0, %v402
        %404 = vmatmul.f32.gmra.mxu0 %v243
        %v405 = vpop.f32.mrf.mxu0
        %v406 = vadd.f32 0.0, %v405
        %407 = vdwg.mxu0
        %408 = vmatpush.msra.mxu0 0.0
        %409 = vmatpush.msra.mxu0 0.0
        %410 = vmatpush.msra.mxu0 0.0
        %411 = vmatpush.msra.mxu0 0.0
        %412 = vmatpush.msra.mxu0 0.0
        %413 = vmatpush.msra.mxu0 0.0
        %414 = vmatpush.msra.mxu0 0.0
        %415 = vmatpush.msra.mxu0 0.0
        %416 = vmatpush.msra.mxu0 0.0
        %417 = vmatpush.msra.mxu0 0.0
        %418 = vmatpush.msra.mxu0 0.0
        %419 = vmatpush.msra.mxu0 0.0
        %420 = vmatpush.msra.mxu0 0.0
        %421 = vmatpush.msra.mxu0 0.0
        %422 = vmatpush.msra.mxu0 %v265
        %423 = vmatpush.msra.mxu0 %v232
        %424 = vmatmul.f32.gmra.mxu0 %v240
        %v425 = vpop.f32.mrf.mxu0
        %v426 = vadd.f32 0.0, %v425
        %427 = vmatmul.f32.gmra.mxu0 %v243
        %v428 = vpop.f32.mrf.mxu0
        %v429 = vadd.f32 0.0, %v428
        %430 = vdwg.mxu0
        %431 = vmatpush.msra.mxu0 0.0
        %432 = vmatpush.msra.mxu0 0.0
        %433 = vmatpush.msra.mxu0 0.0
        %434 = vmatpush.msra.mxu0 0.0
        %435 = vmatpush.msra.mxu0 0.0
        %436 = vmatpush.msra.mxu0 0.0
        %437 = vmatpush.msra.mxu0 0.0
        %438 = vmatpush.msra.mxu0 0.0
        %439 = vmatpush.msra.mxu0 0.0
        %440 = vmatpush.msra.mxu0 0.0
        %441 = vmatpush.msra.mxu0 0.0
        %442 = vmatpush.msra.mxu0 0.0
        %443 = vmatpush.msra.mxu0 0.0
        %444 = vmatpush.msra.mxu0 0.0
        %445 = vmatpush.msra.mxu0 %v268
        %446 = vmatpush.msra.mxu0 %v233
        %447 = vmatmul.f32.gmra.mxu0 %v240
        %v448 = vpop.f32.mrf.mxu0
        %v449 = vadd.f32 0.0, %v448
        %450 = vmatmul.f32.gmra.mxu0 %v243
        %v451 = vpop.f32.mrf.mxu0
        %v452 = vadd.f32 0.0, %v451
        %453 = vdwg.mxu0
        %v454 = vmax.f32 %v288, %v334
        %v455 = vmax.f32 %v311, %v357
        %v456 = vmax.f32 %v291, %v337
        %v457 = vmax.f32 %v314, %v360
        %v458 = vmax.f32 %v380, %v426
        %v459 = vmax.f32 %v403, %v449
        %v460 = vmax.f32 %v383, %v429
        %v461 = vmax.f32 %v406, %v452
        %v462 = vmax.f32 %v454, %v458
        %v463 = vmax.f32 %v455, %v459
        %v464 = vmax.f32 %v456, %v460
        %v465 = vmax.f32 %v457, %v461
        %v466 = vld [vmem:[%s2] sm:$0xff]
        %v467 = vld [vmem:[%s2 + $0x8] sm:$0xff]
        %469 = vset.pattern.permute.xlu0 0
        %470 = vperm.xlu0 %469, %v466
        %v471 = vpop.permute.xlu0 %470
        %474 = vset.pattern.permute.xlu0 0
        %475 = vperm.xlu0 %474, %v467
        %v476 = vpop.permute.xlu0 %475
        %v478 = vadd.f32 %v462, %v471
        %v479 = vadd.f32 %v463, %v471
        %v480 = vadd.f32 %v464, %v476
        %v481 = vadd.f32 %v465, %v476
        %v482 = vmax.f32 %v478, 0.0
        %v483 = vmax.f32 %v479, 0.0
        %v484 = vmax.f32 %v480, 0.0
        %v485 = vmax.f32 %v481, 0.0
        %486 = vst [vmem:[%s214] sm:$0xff] %v482
        %487 = vst [vmem:[%s214 + $0x8] sm:$0xff] %v483
        %488 = vst [vmem:[%s214 + $0x10] sm:$0xff] %v484
        %489 = vst [vmem:[%s214 + $0x18] sm:$0xff] %v485
        %s490 = sand.u32 %s90, 1
        %s491 = sand.u32 %s90, 1
        %s492 = smul.addr %s491, 32
        %s493 = scalar_lea.vmem [#allocation3], %s492
        // Predicated region
        $region56: #{cnn_forward.3} parent=50 // pred_check
          %p494 = pneg %p100
        $region57: #{cnn_forward.3} parent=50 // pred_check_branch
          %496 = sbr.rel (%p494) target = $region59
        $region58: #{cnn_forward.3} parent=50 // pred_region
          %s497 = smul.u32 2, %s14
          %s498 = smul.addr %s497, 8
          %s499 = scalar_lea.vmem %s3, %s498
          // Predicated region
          $region60: #{cnn_forward.3} parent=58 // pred_check
            _
          $region61: #{cnn_forward.3} parent=58 // pred_check_branch
            %501 = sbr.rel (0) target = $region63
          $region62: #{cnn_forward.3} parent=58 // pred_region
            // Predicated region
            $region64: #{cnn_forward.3} parent=62 // pred_check
              _
            $region65: #{cnn_forward.3} parent=62 // pred_check_branch
              %503 = sbr.rel (0) target = $region67
            $region66: #{cnn_forward.3} parent=62 // pred_region
              loop: start=0, step=1, limit=1
              $region68: #{cnn_forward.3} parent=66 // loop_pre_header
                _
              $region69: #{cnn_forward.3} parent=66 // loop_header
                %s505 = sphi 0, %s509
                %p506 = scmp.ge.s32.totalorder %s505, 1
                %s510 = sphi %s493, %s493
                %s511 = sphi %s499, %s499
              $region70: #{cnn_forward.3} parent=66 // loop_header_branch
                %508 = sbr.rel (%p506) target = $region74
              $region71: #{cnn_forward.3} parent=66 // loop_body
                %v512 = vld [vmem:[%s510] sm:$0xff]
                %513 = vst [vmem:[%s511] sm:$0xff] %v512
                %v514 = vld [vmem:[%s510 + $0x8] sm:$0xff]
                %515 = vst [vmem:[%s511 + $0x8] sm:$0xff] %v514
                %v516 = vld [vmem:[%s510 + $0x10] sm:$0xff]
                %517 = vst [vmem:[%s511 + $0x20] sm:$0xff] %v516
                %v518 = vld [vmem:[%s510 + $0x18] sm:$0xff]
                %519 = vst [vmem:[%s511 + $0x28] sm:$0xff] %v518
              $region72: #{cnn_forward.3} parent=66 // loop_footer
                %s509 = sadd.s32 1, %s505
              $region73: #{cnn_forward.3} parent=66 // loop_footer_branch
                %504 = sbr.rel target = $region69
              $region74: #{cnn_forward.3} parent=66 // loop_exit
                _
            $region67: #{cnn_forward.3} parent=62 // pred_fallthru
              _
            // Predicated region
            $region75: #{cnn_forward.3} parent=62 // pred_check
              _
            $region76: #{cnn_forward.3} parent=62 // pred_check_branch
              %521 = sbr.rel target = $region78
            $region77: #{cnn_forward.3} parent=62 // pred_region
              _
            $region78: #{cnn_forward.3} parent=62 // pred_fallthru
              _
          $region63: #{cnn_forward.3} parent=58 // pred_fallthru
            _
          %522 = vnop
        $region59: #{cnn_forward.3} parent=50 // pred_fallthru
          _
      $region51: #{cnn_forward.3} parent=5 // pred_fallthru
        _
      %p523 = scmp.le.s32.totalorder 2, %s9
      // Predicated region
      $region79: #{cnn_forward.3} parent=5 // pred_check
        %p524 = pneg %p523
      $region80: #{cnn_forward.3} parent=5 // pred_check_branch
        %526 = sbr.rel (%p524) target = $region82
      $region81: #{cnn_forward.3} parent=5 // pred_region
        %s527 = ssub.s32 %s9, 2
        // Predicated region
        $region83: #{cnn_forward.3} parent=81 // pred_check
          %p528 = pneg %p106
        $region84: #{cnn_forward.3} parent=81 // pred_check_branch
          %530 = sbr.rel (%p528) target = $region86
        $region85: #{cnn_forward.3} parent=81 // pred_region
          %s531 = sand.u32 %s91, 1
          %s532 = sand.u32 %s91, 1
          %s533 = smul.addr %s532, 32
          %s534 = scalar_lea.vmem [#allocation3], %s533
        $region86: #{cnn_forward.3} parent=81 // pred_fallthru
          _
      $region82: #{cnn_forward.3} parent=5 // pred_fallthru
        _
    $region6: #{cnn_forward.3} parent=1 // loop_footer
      %s13 = sadd.s32 1, %s9
    $region7: #{cnn_forward.3} parent=1 // loop_footer_branch
      %8 = sbr.rel target = $region3
    $region8: #{cnn_forward.3} parent=1 // loop_exit
      _

// kernel: cnn_forward.4
$region0: #{cnn_forward.4}
  #allocation0 [shape = 'u32[]', space=smem, size = 0x4, offset = 0x4, fixed_abs, tag = 'smem constant byte address 0x4 - core index']
  #allocation1 [shape = 'u32[72,128]{1,0:T(1,128)}', space=vmem, size = 0x9000, scoped, tag = 'internal scratch']
  %s0 = inlined_call_operand.vmem [shape: f32[4,144,128], index: 0, kind: input, shape index: {}]
  %s1 = inlined_call_operand.vmem [shape: f32[32,144], index: 1, kind: input, shape index: {}]
  %s2 = inlined_call_operand.vmem [shape: f32[32,1], index: 2, kind: input, shape index: {}]
  %s3 = inlined_call_operand.vmem [shape: f32[32,128], index: 3, kind: output, shape index: {}]
  %s4 = sld [smem:[#allocation0]]
  $region22: #{cnn_forward.4} parent=0
    _
  %s6 = ssub.s32 1, %s4
  %s7 = scalar_select 0, %s6, %s4
  // Predicated region
  $region2: #{cnn_forward.4} parent=0 // pred_check
    _
  $region3: #{cnn_forward.4} parent=0 // pred_check_branch
    %9 = sbr.rel (0) target = $region5
  $region4: #{cnn_forward.4} parent=0 // pred_region
    _
  $region5: #{cnn_forward.4} parent=0 // pred_fallthru
    _
  // Predicated region
  $region6: #{cnn_forward.4} parent=0 // pred_check
    _
  $region7: #{cnn_forward.4} parent=0 // pred_check_branch
    %11 = sbr.rel (0) target = $region9
  $region8: #{cnn_forward.4} parent=0 // pred_region
    _
  $region9: #{cnn_forward.4} parent=0 // pred_fallthru
    _
  // Predicated region
  $region10: #{cnn_forward.4} parent=0 // pred_check
    _
  $region11: #{cnn_forward.4} parent=0 // pred_check_branch
    %13 = sbr.rel (0) target = $region13
  $region12: #{cnn_forward.4} parent=0 // pred_region
    _
  $region13: #{cnn_forward.4} parent=0 // pred_fallthru
    _
  %v14 = vld [vmem:[%s0] sm:$0xff]
  %v15 = vld [vmem:[%s0 + $0x8] sm:$0xff]
  %v16 = vld [vmem:[%s0 + $0x10] sm:$0xff]
  %v17 = vld [vmem:[%s0 + $0x18] sm:$0xff]
  %v18 = vld [vmem:[%s0 + $0x20] sm:$0xff]
  %v19 = vld [vmem:[%s0 + $0x28] sm:$0xff]
  %v20 = vld [vmem:[%s0 + $0x30] sm:$0xff]
  %v21 = vld [vmem:[%s0 + $0x38] sm:$0xff]
  %v22 = vld [vmem:[%s0 + $0x40] sm:$0xff]
  %v23 = vld [vmem:[%s0 + $0x48] sm:$0xff]
  %v24 = vld [vmem:[%s0 + $0x50] sm:$0xff]
  %v25 = vld [vmem:[%s0 + $0x58] sm:$0xff]
  %v26 = vld [vmem:[%s0 + $0x60] sm:$0xff]
  %v27 = vld [vmem:[%s0 + $0x68] sm:$0xff]
  %v28 = vld [vmem:[%s0 + $0x70] sm:$0xff]
  %v29 = vld [vmem:[%s0 + $0x78] sm:$0xff]
  %v30 = vld [vmem:[%s0 + $0x80] sm:$0xff]
  %v31 = vld [vmem:[%s0 + $0x88] sm:$0xff]
  %s32 = scalar_lea.vmem %s0, 144
  %v33 = vld [vmem:[%s32] sm:$0xff]
  %v34 = vld [vmem:[%s32 + $0x8] sm:$0xff]
  %v35 = vld [vmem:[%s32 + $0x10] sm:$0xff]
  %v36 = vld [vmem:[%s32 + $0x18] sm:$0xff]
  %v37 = vld [vmem:[%s32 + $0x20] sm:$0xff]
  %v38 = vld [vmem:[%s32 + $0x28] sm:$0xff]
  %v39 = vld [vmem:[%s32 + $0x30] sm:$0xff]
  %v40 = vld [vmem:[%s32 + $0x38] sm:$0xff]
  %v41 = vld [vmem:[%s32 + $0x40] sm:$0xff]
  %v42 = vld [vmem:[%s32 + $0x48] sm:$0xff]
  %v43 = vld [vmem:[%s32 + $0x50] sm:$0xff]
  %v44 = vld [vmem:[%s32 + $0x58] sm:$0xff]
  %v45 = vld [vmem:[%s32 + $0x60] sm:$0xff]
  %v46 = vld [vmem:[%s32 + $0x68] sm:$0xff]
  %v47 = vld [vmem:[%s32 + $0x70] sm:$0xff]
  %v48 = vld [vmem:[%s32 + $0x78] sm:$0xff]
  %v49 = vld [vmem:[%s32 + $0x80] sm:$0xff]
  %v50 = vld [vmem:[%s32 + $0x88] sm:$0xff]
  %s51 = scalar_lea.vmem %s0, 288
  %v52 = vld [vmem:[%s51] sm:$0xff]
  %v53 = vld [vmem:[%s51 + $0x8] sm:$0xff]
  %v54 = vld [vmem:[%s51 + $0x10] sm:$0xff]
  %v55 = vld [vmem:[%s51 + $0x18] sm:$0xff]
  %v56 = vld [vmem:[%s51 + $0x20] sm:$0xff]
  %v57 = vld [vmem:[%s51 + $0x28] sm:$0xff]
  %v58 = vld [vmem:[%s51 + $0x30] sm:$0xff]
  %v59 = vld [vmem:[%s51 + $0x38] sm:$0xff]
  %v60 = vld [vmem:[%s51 + $0x40] sm:$0xff]
  %v61 = vld [vmem:[%s51 + $0x48] sm:$0xff]
  %v62 = vld [vmem:[%s51 + $0x50] sm:$0xff]
  %v63 = vld [vmem:[%s51 + $0x58] sm:$0xff]
  %v64 = vld [vmem:[%s51 + $0x60] sm:$0xff]
  %v65 = vld [vmem:[%s51 + $0x68] sm:$0xff]
  %v66 = vld [vmem:[%s51 + $0x70] sm:$0xff]
  %v67 = vld [vmem:[%s51 + $0x78] sm:$0xff]
  %v68 = vld [vmem:[%s51 + $0x80] sm:$0xff]
  %v69 = vld [vmem:[%s51 + $0x88] sm:$0xff]
  %s70 = scalar_lea.vmem %s0, 432
  %v71 = vld [vmem:[%s70] sm:$0xff]
  %v72 = vld [vmem:[%s70 + $0x8] sm:$0xff]
  %v73 = vld [vmem:[%s70 + $0x10] sm:$0xff]
  %v74 = vld [vmem:[%s70 + $0x18] sm:$0xff]
  %v75 = vld [vmem:[%s70 + $0x20] sm:$0xff]
  %v76 = vld [vmem:[%s70 + $0x28] sm:$0xff]
  %v77 = vld [vmem:[%s70 + $0x30] sm:$0xff]
  %v78 = vld [vmem:[%s70 + $0x38] sm:$0xff]
  %v79 = vld [vmem:[%s70 + $0x40] sm:$0xff]
  %v80 = vld [vmem:[%s70 + $0x48] sm:$0xff]
  %v81 = vld [vmem:[%s70 + $0x50] sm:$0xff]
  %v82 = vld [vmem:[%s70 + $0x58] sm:$0xff]
  %v83 = vld [vmem:[%s70 + $0x60] sm:$0xff]
  %v84 = vld [vmem:[%s70 + $0x68] sm:$0xff]
  %v85 = vld [vmem:[%s70 + $0x70] sm:$0xff]
  %v86 = vld [vmem:[%s70 + $0x78] sm:$0xff]
  %v87 = vld [vmem:[%s70 + $0x80] sm:$0xff]
  %v88 = vld [vmem:[%s70 + $0x88] sm:$0xff]
  %v89 = vld [vmem:[%s1] sm:$0xff]
  %v90 = vld [vmem:[%s1 + $0x8] sm:$0xff]
  %v91 = vld [vmem:[%s1 + $0x10] sm:$0xff]
  %v92 = vld [vmem:[%s1 + $0x18] sm:$0xff]
  %v93 = vld [vmem:[%s1 + $0x20] sm:$0xff]
  %v94 = vld [vmem:[%s1 + $0x28] sm:$0xff]
  %v95 = vld [vmem:[%s1 + $0x30] sm:$0xff]
  %v96 = vld [vmem:[%s1 + $0x38] sm:$0xff]
  %vm97 = vcmask 130048
  %v99 = vsel %vm97, %v90, 0
  %v102 = vsel %vm97, %v92, 0
  %v105 = vsel %vm97, %v94, 0
  %v108 = vsel %vm97, %v96, 0
  %110 = vmatpush.msra.mxu0 %v29
  %111 = vmatpush.msra.mxu0 %v28
  %112 = vmatpush.msra.mxu0 %v27
  %113 = vmatpush.msra.mxu0 %v26
  %114 = vmatpush.msra.mxu0 %v25
  %115 = vmatpush.msra.mxu0 %v24
  %116 = vmatpush.msra.mxu0 %v23
  %117 = vmatpush.msra.mxu0 %v22
  %118 = vmatpush.msra.mxu0 %v21
  %119 = vmatpush.msra.mxu0 %v20
  %120 = vmatpush.msra.mxu0 %v19
  %121 = vmatpush.msra.mxu0 %v18
  %122 = vmatpush.msra.mxu0 %v17
  %123 = vmatpush.msra.mxu0 %v16
  %124 = vmatpush.msra.mxu0 %v15
  %125 = vmatpush.msra.mxu0 %v14
  %126 = vmatmul.f32.gmra.mxu0 %v89
  %v127 = vpop.f32.mrf.mxu0
  %v128 = vadd.f32 0.0, %v127
  %129 = vmatmul.f32.gmra.mxu0 %v91
  %v130 = vpop.f32.mrf.mxu0
  %v131 = vadd.f32 0.0, %v130
  %132 = vmatmul.f32.gmra.mxu0 %v93
  %v133 = vpop.f32.mrf.mxu0
  %v134 = vadd.f32 0.0, %v133
  %135 = vmatmul.f32.gmra.mxu0 %v95
  %v136 = vpop.f32.mrf.mxu0
  %v137 = vadd.f32 0.0, %v136
  %138 = vdwg.mxu0
  %139 = vmatpush.msra.mxu0 0.0
  %140 = vmatpush.msra.mxu0 0.0
  %141 = vmatpush.msra.mxu0 0.0
  %142 = vmatpush.msra.mxu0 0.0
  %143 = vmatpush.msra.mxu0 0.0
  %144 = vmatpush.msra.mxu0 0.0
  %145 = vmatpush.msra.mxu0 0.0
  %146 = vmatpush.msra.mxu0 0.0
  %147 = vmatpush.msra.mxu0 0.0
  %148 = vmatpush.msra.mxu0 0.0
  %149 = vmatpush.msra.mxu0 0.0
  %150 = vmatpush.msra.mxu0 0.0
  %151 = vmatpush.msra.mxu0 0.0
  %152 = vmatpush.msra.mxu0 0.0
  %153 = vmatpush.msra.mxu0 %v31
  %154 = vmatpush.msra.mxu0 %v30
  %155 = vmatmul.f32.gmra.mxu0 %v99
  %v156 = vpop.f32.mrf.mxu0
  %v157 = vadd.f32 %v128, %v156
  %158 = vmatmul.f32.gmra.mxu0 %v102
  %v159 = vpop.f32.mrf.mxu0
  %v160 = vadd.f32 %v131, %v159
  %161 = vmatmul.f32.gmra.mxu0 %v105
  %v162 = vpop.f32.mrf.mxu0
  %v163 = vadd.f32 %v134, %v162
  %164 = vmatmul.f32.gmra.mxu0 %v108
  %v165 = vpop.f32.mrf.mxu0
  %v166 = vadd.f32 %v137, %v165
  %167 = vdwg.mxu0
  %168 = vmatpush.msra.mxu0 %v48
  %169 = vmatpush.msra.mxu0 %v47
  %170 = vmatpush.msra.mxu0 %v46
  %171 = vmatpush.msra.mxu0 %v45
  %172 = vmatpush.msra.mxu0 %v44
  %173 = vmatpush.msra.mxu0 %v43
  %174 = vmatpush.msra.mxu0 %v42
  %175 = vmatpush.msra.mxu0 %v41
  %176 = vmatpush.msra.mxu0 %v40
  %177 = vmatpush.msra.mxu0 %v39
  %178 = vmatpush.msra.mxu0 %v38
  %179 = vmatpush.msra.mxu0 %v37
  %180 = vmatpush.msra.mxu0 %v36
  %181 = vmatpush.msra.mxu0 %v35
  %182 = vmatpush.msra.mxu0 %v34
  %183 = vmatpush.msra.mxu0 %v33
  %184 = vmatmul.f32.gmra.mxu0 %v89
  %v185 = vpop.f32.mrf.mxu0
  %v186 = vadd.f32 0.0, %v185
  %187 = vmatmul.f32.gmra.mxu0 %v91
  %v188 = vpop.f32.mrf.mxu0
  %v189 = vadd.f32 0.0, %v188
  %190 = vmatmul.f32.gmra.mxu0 %v93
  %v191 = vpop.f32.mrf.mxu0
  %v192 = vadd.f32 0.0, %v191
  %193 = vmatmul.f32.gmra.mxu0 %v95
  %v194 = vpop.f32.mrf.mxu0
  %v195 = vadd.f32 0.0, %v194
  %196 = vdwg.mxu0
  %197 = vmatpush.msra.mxu0 0.0
  %198 = vmatpush.msra.mxu0 0.0
  %199 = vmatpush.msra.mxu0 0.0
  %200 = vmatpush.msra.mxu0 0.0
  %201 = vmatpush.msra.mxu0 0.0
  %202 = vmatpush.msra.mxu0 0.0
  %203 = vmatpush.msra.mxu0 0.0
  %204 = vmatpush.msra.mxu0 0.0
  %205 = vmatpush.msra.mxu0 0.0
  %206 = vmatpush.msra.mxu0 0.0
  %207 = vmatpush.msra.mxu0 0.0
  %208 = vmatpush.msra.mxu0 0.0
  %209 = vmatpush.msra.mxu0 0.0
  %210 = vmatpush.msra.mxu0 0.0
  %211 = vmatpush.msra.mxu0 %v50
  %212 = vmatpush.msra.mxu0 %v49
  %213 = vmatmul.f32.gmra.mxu0 %v99
  %v214 = vpop.f32.mrf.mxu0
  %v215 = vadd.f32 %v186, %v214
  %216 = vmatmul.f32.gmra.mxu0 %v102
  %v217 = vpop.f32.mrf.mxu0
  %v218 = vadd.f32 %v189, %v217
  %219 = vmatmul.f32.gmra.mxu0 %v105
  %v220 = vpop.f32.mrf.mxu0
  %v221 = vadd.f32 %v192, %v220
  %222 = vmatmul.f32.gmra.mxu0 %v108
  %v223 = vpop.f32.mrf.mxu0
  %v224 = vadd.f32 %v195, %v223
  %225 = vdwg.mxu0
  %226 = vmatpush.msra.mxu0 %v67
  %227 = vmatpush.msra.mxu0 %v66
  %228 = vmatpush.msra.mxu0 %v65
  %229 = vmatpush.msra.mxu0 %v64
  %230 = vmatpush.msra.mxu0 %v63
  %231 = vmatpush.msra.mxu0 %v62
  %232 = vmatpush.msra.mxu0 %v61
  %233 = vmatpush.msra.mxu0 %v60
  %234 = vmatpush.msra.mxu0 %v59
  %235 = vmatpush.msra.mxu0 %v58
  %236 = vmatpush.msra.mxu0 %v57
  %237 = vmatpush.msra.mxu0 %v56
  %238 = vmatpush.msra.mxu0 %v55
  %239 = vmatpush.msra.mxu0 %v54
  %240 = vmatpush.msra.mxu0 %v53
  %241 = vmatpush.msra.mxu0 %v52
  %242 = vmatmul.f32.gmra.mxu0 %v89
  %v243 = vpop.f32.mrf.mxu0
  %v244 = vadd.f32 0.0, %v243
  %245 = vmatmul.f32.gmra.mxu0 %v91
  %v246 = vpop.f32.mrf.mxu0
  %v247 = vadd.f32 0.0, %v246
  %248 = vmatmul.f32.gmra.mxu0 %v93
  %v249 = vpop.f32.mrf.mxu0
  %v250 = vadd.f32 0.0, %v249
  %251 = vmatmul.f32.gmra.mxu0 %v95
  %v252 = vpop.f32.mrf.mxu0
  %v253 = vadd.f32 0.0, %v252
  %254 = vdwg.mxu0
  %255 = vmatpush.msra.mxu0 0.0
  %256 = vmatpush.msra.mxu0 0.0
  %257 = vmatpush.msra.mxu0 0.0
  %258 = vmatpush.msra.mxu0 0.0
  %259 = vmatpush.msra.mxu0 0.0
  %260 = vmatpush.msra.mxu0 0.0
  %261 = vmatpush.msra.mxu0 0.0
  %262 = vmatpush.msra.mxu0 0.0
  %263 = vmatpush.msra.mxu0 0.0
  %264 = vmatpush.msra.mxu0 0.0
  %265 = vmatpush.msra.mxu0 0.0
  %266 = vmatpush.msra.mxu0 0.0
  %267 = vmatpush.msra.mxu0 0.0
  %268 = vmatpush.msra.mxu0 0.0
  %269 = vmatpush.msra.mxu0 %v69
  %270 = vmatpush.msra.mxu0 %v68
  %271 = vmatmul.f32.gmra.mxu0 %v99
  %v272 = vpop.f32.mrf.mxu0
  %v273 = vadd.f32 %v244, %v272
  %274 = vmatmul.f32.gmra.mxu0 %v102
  %v275 = vpop.f32.mrf.mxu0
  %v276 = vadd.f32 %v247, %v275
  %277 = vmatmul.f32.gmra.mxu0 %v105
  %v278 = vpop.f32.mrf.mxu0
  %v279 = vadd.f32 %v250, %v278
  %280 = vmatmul.f32.gmra.mxu0 %v108
  %v281 = vpop.f32.mrf.mxu0
  %v282 = vadd.f32 %v253, %v281
  %283 = vdwg.mxu0
  %284 = vmatpush.msra.mxu0 %v86
  %285 = vmatpush.msra.mxu0 %v85
  %286 = vmatpush.msra.mxu0 %v84
  %287 = vmatpush.msra.mxu0 %v83
  %288 = vmatpush.msra.mxu0 %v82
  %289 = vmatpush.msra.mxu0 %v81
  %290 = vmatpush.msra.mxu0 %v80
  %291 = vmatpush.msra.mxu0 %v79
  %292 = vmatpush.msra.mxu0 %v78
  %293 = vmatpush.msra.mxu0 %v77
  %294 = vmatpush.msra.mxu0 %v76
  %295 = vmatpush.msra.mxu0 %v75
  %296 = vmatpush.msra.mxu0 %v74
  %297 = vmatpush.msra.mxu0 %v73
  %298 = vmatpush.msra.mxu0 %v72
  %299 = vmatpush.msra.mxu0 %v71
  %300 = vmatmul.f32.gmra.mxu0 %v89
  %v301 = vpop.f32.mrf.mxu0
  %v302 = vadd.f32 0.0, %v301
  %303 = vmatmul.f32.gmra.mxu0 %v91
  %v304 = vpop.f32.mrf.mxu0
  %v305 = vadd.f32 0.0, %v304
  %306 = vmatmul.f32.gmra.mxu0 %v93
  %v307 = vpop.f32.mrf.mxu0
  %v308 = vadd.f32 0.0, %v307
  %309 = vmatmul.f32.gmra.mxu0 %v95
  %v310 = vpop.f32.mrf.mxu0
  %v311 = vadd.f32 0.0, %v310
  %312 = vdwg.mxu0
  %313 = vmatpush.msra.mxu0 0.0
  %314 = vmatpush.msra.mxu0 0.0
  %315 = vmatpush.msra.mxu0 0.0
  %316 = vmatpush.msra.mxu0 0.0
  %317 = vmatpush.msra.mxu0 0.0
  %318 = vmatpush.msra.mxu0 0.0
  %319 = vmatpush.msra.mxu0 0.0
  %320 = vmatpush.msra.mxu0 0.0
  %321 = vmatpush.msra.mxu0 0.0
  %322 = vmatpush.msra.mxu0 0.0
  %323 = vmatpush.msra.mxu0 0.0
  %324 = vmatpush.msra.mxu0 0.0
  %325 = vmatpush.msra.mxu0 0.0
  %326 = vmatpush.msra.mxu0 0.0
  %327 = vmatpush.msra.mxu0 %v88
  %328 = vmatpush.msra.mxu0 %v87
  %329 = vmatmul.f32.gmra.mxu0 %v99
  %v330 = vpop.f32.mrf.mxu0
  %v331 = vadd.f32 %v302, %v330
  %332 = vmatmul.f32.gmra.mxu0 %v102
  %v333 = vpop.f32.mrf.mxu0
  %v334 = vadd.f32 %v305, %v333
  %335 = vmatmul.f32.gmra.mxu0 %v105
  %v336 = vpop.f32.mrf.mxu0
  %v337 = vadd.f32 %v308, %v336
  %338 = vmatmul.f32.gmra.mxu0 %v108
  %v339 = vpop.f32.mrf.mxu0
  %v340 = vadd.f32 %v311, %v339
  %341 = vdwg.mxu0
  %v342 = vmax.f32 %v157, %v215
  %v343 = vmax.f32 %v160, %v218
  %v344 = vmax.f32 %v163, %v221
  %v345 = vmax.f32 %v166, %v224
  %v346 = vmax.f32 %v273, %v331
  %v347 = vmax.f32 %v276, %v334
  %v348 = vmax.f32 %v279, %v337
  %v349 = vmax.f32 %v282, %v340
  %v350 = vmax.f32 %v342, %v346
  %v351 = vmax.f32 %v343, %v347
  %v352 = vmax.f32 %v344, %v348
  %v353 = vmax.f32 %v345, %v349
  %v354 = vld [vmem:[%s2] sm:$0xff]
  %v355 = vld [vmem:[%s2 + $0x8] sm:$0xff]
  %v356 = vld [vmem:[%s2 + $0x10] sm:$0xff]
  %v357 = vld [vmem:[%s2 + $0x18] sm:$0xff]
  %359 = vset.pattern.permute.xlu0 0
  %360 = vperm.xlu0 %359, %v354
  %v361 = vpop.permute.xlu0 %360
  %364 = vset.pattern.permute.xlu0 0
  %365 = vperm.xlu0 %364, %v355
  %v366 = vpop.permute.xlu0 %365
  %369 = vset.pattern.permute.xlu0 0
  %370 = vperm.xlu0 %369, %v356
  %v371 = vpop.permute.xlu0 %370
  %374 = vset.pattern.permute.xlu0 0
  %375 = vperm.xlu0 %374, %v357
  %v376 = vpop.permute.xlu0 %375
  %v378 = vadd.f32 %v350, %v361
  %v379 = vadd.f32 %v351, %v366
  %v380 = vadd.f32 %v352, %v371
  %v381 = vadd.f32 %v353, %v376
  %v382 = vmax.f32 %v378, 0.0
  %v383 = vmax.f32 %v379, 0.0
  %v384 = vmax.f32 %v380, 0.0
  %v385 = vmax.f32 %v381, 0.0
  %386 = vst [vmem:[%s3] sm:$0xff] %v382
  %387 = vst [vmem:[%s3 + $0x8] sm:$0xff] %v383
  %388 = vst [vmem:[%s3 + $0x10] sm:$0xff] %v384
  %389 = vst [vmem:[%s3 + $0x18] sm:$0xff] %v385
  // Predicated region
  $region14: #{cnn_forward.4} parent=0 // pred_check
    _
  $region15: #{cnn_forward.4} parent=0 // pred_check_branch
    %391 = sbr.rel (0) target = $region17
  $region16: #{cnn_forward.4} parent=0 // pred_region
    _
  $region17: #{cnn_forward.4} parent=0 // pred_fallthru
    _
  // Predicated region
  $region18: #{cnn_forward.4} parent=0 // pred_check
    _
  $region19: #{cnn_forward.4} parent=0 // pred_check_branch
    %393 = sbr.rel (0) target = $region21
  $region20: #{cnn_forward.4} parent=0 // pred_region
    _
  $region21: #{cnn_forward.4} parent=0 // pred_fallthru
    _

// kernel: cnn_forward.5
$region0: #{cnn_forward.5}
  #allocation0 [shape = 'u32[]', space=smem, size = 0x4, offset = 0x4, fixed_abs, tag = 'smem constant byte address 0x4 - core index']
  #allocation1 [shape = 'u32[72,128]{1,0:T(1,128)}', space=vmem, size = 0x9000, scoped, tag = 'internal scratch']
  %s0 = inlined_call_operand.vmem [shape: f32[2,800], index: 0, kind: input, shape index: {}]
  %s1 = inlined_call_operand.vmem [shape: f32[800,128], index: 1, kind: input, shape index: {}]
  %s2 = inlined_call_operand.vmem [shape: f32[1,128], index: 2, kind: input, shape index: {}]
  %s3 = inlined_call_operand.vmem [shape: f32[128,10], index: 3, kind: input, shape index: {}]
  %s4 = inlined_call_operand.vmem [shape: f32[1,10], index: 4, kind: input, shape index: {}]
  %s5 = inlined_call_operand.hbm [shape: f32[2,10], index: 5, kind: output, shape index: {}]
  %s6 = sld [smem:[#allocation0]]
  $region30: #{cnn_forward.5} parent=0
    _
  %s8 = ssub.s32 1, %s6
  %s9 = scalar_select 0, %s8, %s6
  $region1: #{cnn_forward.5} parent=0
    #allocation2 [shape = 'u8[1024]{0}', space=vmem, size = 0x400, scoped, tag = 'output window, operand 0, single buffered']
    #allocation3 [shape = 's32[1]{0}', space=sflag, size = 0x4, scoped, tag = 'scoped memory for cnn_forward.5']
    %10 = vsyncpa [#allocation3], 0
    // Predicated region
    $region2: #{cnn_forward.5} parent=1 // pred_check
      _
    $region3: #{cnn_forward.5} parent=1 // pred_check_branch
      %12 = sbr.rel (0) target = $region5
    $region4: #{cnn_forward.5} parent=1 // pred_region
      _
    $region5: #{cnn_forward.5} parent=1 // pred_fallthru
      _
    // Predicated region
    $region6: #{cnn_forward.5} parent=1 // pred_check
      _
    $region7: #{cnn_forward.5} parent=1 // pred_check_branch
      %14 = sbr.rel (0) target = $region9
    $region8: #{cnn_forward.5} parent=1 // pred_region
      _
    $region9: #{cnn_forward.5} parent=1 // pred_fallthru
      _
    // Predicated region
    $region10: #{cnn_forward.5} parent=1 // pred_check
      _
    $region11: #{cnn_forward.5} parent=1 // pred_check_branch
      %16 = sbr.rel (0) target = $region13
    $region12: #{cnn_forward.5} parent=1 // pred_region
      _
    $region13: #{cnn_forward.5} parent=1 // pred_fallthru
      _
    // Predicated region
    $region14: #{cnn_forward.5} parent=1 // pred_check
      _
    $region15: #{cnn_forward.5} parent=1 // pred_check_branch
      %18 = sbr.rel (0) target = $region17
    $region16: #{cnn_forward.5} parent=1 // pred_region
      _
    $region17: #{cnn_forward.5} parent=1 // pred_fallthru
      _
    // Predicated region
    $region18: #{cnn_forward.5} parent=1 // pred_check
      _
    $region19: #{cnn_forward.5} parent=1 // pred_check_branch
      %20 = sbr.rel (0) target = $region21
    $region20: #{cnn_forward.5} parent=1 // pred_region
      _
    $region21: #{cnn_forward.5} parent=1 // pred_fallthru
      _
    %v21 = vld [vmem:[%s0] sm:$0xff]
    %v22 = vld [vmem:[%s0 + $0x8] sm:$0x3f]
    %v23 = vld [vmem:[%s1] sm:$0xff]
    %v24 = vld [vmem:[%s1 + $0x8] sm:$0xff]
    %v25 = vld [vmem:[%s1 + $0x10] sm:$0xff]
    %v26 = vld [vmem:[%s1 + $0x18] sm:$0xff]
    %v27 = vld [vmem:[%s1 + $0x20] sm:$0xff]
    %v28 = vld [vmem:[%s1 + $0x28] sm:$0xff]
    %v29 = vld [vmem:[%s1 + $0x30] sm:$0xff]
    %v30 = vld [vmem:[%s1 + $0x38] sm:$0xff]
    %v31 = vld [vmem:[%s1 + $0x40] sm:$0xff]
    %v32 = vld [vmem:[%s1 + $0x48] sm:$0xff]
    %v33 = vld [vmem:[%s1 + $0x50] sm:$0xff]
    %v34 = vld [vmem:[%s1 + $0x58] sm:$0xff]
    %v35 = vld [vmem:[%s1 + $0x60] sm:$0xff]
    %v36 = vld [vmem:[%s1 + $0x68] sm:$0xff]
    %v37 = vld [vmem:[%s1 + $0x70] sm:$0xff]
    %v38 = vld [vmem:[%s1 + $0x78] sm:$0xff]
    %v39 = vld [vmem:[%s1 + $0x80] sm:$0xff]
    %v40 = vld [vmem:[%s1 + $0x88] sm:$0xff]
    %v41 = vld [vmem:[%s1 + $0x90] sm:$0xff]
    %v42 = vld [vmem:[%s1 + $0x98] sm:$0xff]
    %v43 = vld [vmem:[%s1 + $0xa0] sm:$0xff]
    %v44 = vld [vmem:[%s1 + $0xa8] sm:$0xff]
    %v45 = vld [vmem:[%s1 + $0xb0] sm:$0xff]
    %v46 = vld [vmem:[%s1 + $0xb8] sm:$0xff]
    %v47 = vld [vmem:[%s1 + $0xc0] sm:$0xff]
    %v48 = vld [vmem:[%s1 + $0xc8] sm:$0xff]
    %v49 = vld [vmem:[%s1 + $0xd0] sm:$0xff]
    %v50 = vld [vmem:[%s1 + $0xd8] sm:$0xff]
    %v51 = vld [vmem:[%s1 + $0xe0] sm:$0xff]
    %v52 = vld [vmem:[%s1 + $0xe8] sm:$0xff]
    %v53 = vld [vmem:[%s1 + $0xf0] sm:$0xff]
    %v54 = vld [vmem:[%s1 + $0xf8] sm:$0xff]
    %v55 = vld [vmem:[%s1 + $0x100] sm:$0xff]
    %v56 = vld [vmem:[%s1 + $0x108] sm:$0xff]
    %v57 = vld [vmem:[%s1 + $0x110] sm:$0xff]
    %v58 = vld [vmem:[%s1 + $0x118] sm:$0xff]
    %v59 = vld [vmem:[%s1 + $0x120] sm:$0xff]
    %v60 = vld [vmem:[%s1 + $0x128] sm:$0xff]
    %v61 = vld [vmem:[%s1 + $0x130] sm:$0xff]
    %v62 = vld [vmem:[%s1 + $0x138] sm:$0xff]
    %v63 = vld [vmem:[%s1 + $0x140] sm:$0xff]
    %v64 = vld [vmem:[%s1 + $0x148] sm:$0xff]
    %v65 = vld [vmem:[%s1 + $0x150] sm:$0xff]
    %v66 = vld [vmem:[%s1 + $0x158] sm:$0xff]
    %v67 = vld [vmem:[%s1 + $0x160] sm:$0xff]
    %v68 = vld [vmem:[%s1 + $0x168] sm:$0xff]
    %v69 = vld [vmem:[%s1 + $0x170] sm:$0xff]
    %v70 = vld [vmem:[%s1 + $0x178] sm:$0xff]
    %v71 = vld [vmem:[%s1 + $0x180] sm:$0xff]
    %v72 = vld [vmem:[%s1 + $0x188] sm:$0xff]
    %v73 = vld [vmem:[%s1 + $0x190] sm:$0xff]
    %v74 = vld [vmem:[%s1 + $0x198] sm:$0xff]
    %v75 = vld [vmem:[%s1 + $0x1a0] sm:$0xff]
    %v76 = vld [vmem:[%s1 + $0x1a8] sm:$0xff]
    %v77 = vld [vmem:[%s1 + $0x1b0] sm:$0xff]
    %v78 = vld [vmem:[%s1 + $0x1b8] sm:$0xff]
    %v79 = vld [vmem:[%s1 + $0x1c0] sm:$0xff]
    %v80 = vld [vmem:[%s1 + $0x1c8] sm:$0xff]
    %v81 = vld [vmem:[%s1 + $0x1d0] sm:$0xff]
    %v82 = vld [vmem:[%s1 + $0x1d8] sm:$0xff]
    %v83 = vld [vmem:[%s1 + $0x1e0] sm:$0xff]
    %v84 = vld [vmem:[%s1 + $0x1e8] sm:$0xff]
    %v85 = vld [vmem:[%s1 + $0x1f0] sm:$0xff]
    %v86 = vld [vmem:[%s1 + $0x1f8] sm:$0xff]
    %v87 = vld [vmem:[%s1 + $0x200] sm:$0xff]
    %v88 = vld [vmem:[%s1 + $0x208] sm:$0xff]
    %v89 = vld [vmem:[%s1 + $0x210] sm:$0xff]
    %v90 = vld [vmem:[%s1 + $0x218] sm:$0xff]
    %v91 = vld [vmem:[%s1 + $0x220] sm:$0xff]
    %v92 = vld [vmem:[%s1 + $0x228] sm:$0xff]
    %v93 = vld [vmem:[%s1 + $0x230] sm:$0xff]
    %v94 = vld [vmem:[%s1 + $0x238] sm:$0xff]
    %v95 = vld [vmem:[%s1 + $0x240] sm:$0xff]
    %v96 = vld [vmem:[%s1 + $0x248] sm:$0xff]
    %v97 = vld [vmem:[%s1 + $0x250] sm:$0xff]
    %v98 = vld [vmem:[%s1 + $0x258] sm:$0xff]
    %v99 = vld [vmem:[%s1 + $0x260] sm:$0xff]
    %v100 = vld [vmem:[%s1 + $0x268] sm:$0xff]
    %v101 = vld [vmem:[%s1 + $0x270] sm:$0xff]
    %v102 = vld [vmem:[%s1 + $0x278] sm:$0xff]
    %v103 = vld [vmem:[%s1 + $0x280] sm:$0xff]
    %v104 = vld [vmem:[%s1 + $0x288] sm:$0xff]
    %v105 = vld [vmem:[%s1 + $0x290] sm:$0xff]
    %v106 = vld [vmem:[%s1 + $0x298] sm:$0xff]
    %v107 = vld [vmem:[%s1 + $0x2a0] sm:$0xff]
    %v108 = vld [vmem:[%s1 + $0x2a8] sm:$0xff]
    %v109 = vld [vmem:[%s1 + $0x2b0] sm:$0xff]
    %v110 = vld [vmem:[%s1 + $0x2b8] sm:$0xff]
    %v111 = vld [vmem:[%s1 + $0x2c0] sm:$0xff]
    %v112 = vld [vmem:[%s1 + $0x2c8] sm:$0xff]
    %v113 = vld [vmem:[%s1 + $0x2d0] sm:$0xff]
    %v114 = vld [vmem:[%s1 + $0x2d8] sm:$0xff]
    %v115 = vld [vmem:[%s1 + $0x2e0] sm:$0xff]
    %v116 = vld [vmem:[%s1 + $0x2e8] sm:$0xff]
    %v117 = vld [vmem:[%s1 + $0x2f0] sm:$0xff]
    %v118 = vld [vmem:[%s1 + $0x2f8] sm:$0xff]
    %v119 = vld [vmem:[%s1 + $0x300] sm:$0xff]
    %v120 = vld [vmem:[%s1 + $0x308] sm:$0xff]
    %v121 = vld [vmem:[%s1 + $0x310] sm:$0xff]
    %v122 = vld [vmem:[%s1 + $0x318] sm:$0xff]
    %v123 = vld [vmem:[%s2] sm:$0x1]
    %v125 = vperm.slane %v123, 0
    %129 = vst [vmem:[#allocation1] ss:$4 sm:$0xff] %v21
    %s130 = scalar_lea.vmem [#allocation1], 32
    %131 = vst [vmem:[%s130] ss:$4 sm:$0xff] %v22
    %v132 = vld.sshfl [vmem:[#allocation1] sm:$0xff pattern:$0x73625140]
    %v133 = vld.sshfl [vmem:[#allocation1 + $0x8] sm:$0xff pattern:$0x73625140]
    %v134 = vld.sshfl [vmem:[#allocation1 + $0x10] sm:$0xff pattern:$0x73625140]
    %v135 = vld.sshfl [vmem:[#allocation1 + $0x18] sm:$0xff pattern:$0x73625140]
    %v136 = vld.sshfl [vmem:[#allocation1 + $0x20] sm:$0xff pattern:$0x73625140]
    %v137 = vld.sshfl [vmem:[#allocation1 + $0x28] sm:$0xff pattern:$0x73625140]
    %v138 = vld.sshfl [vmem:[#allocation1 + $0x30] sm:$0xff pattern:$0x73625140]
    %vm145 = vcmask 261120
    %v146 = vsel %vm145, %v138, 0
    %148 = vmatpush.msra.mxu0 %v38
    %149 = vmatpush.msra.mxu0 %v37
    %150 = vmatpush.msra.mxu0 %v36
    %151 = vmatpush.msra.mxu0 %v35
    %152 = vmatpush.msra.mxu0 %v34
    %153 = vmatpush.msra.mxu0 %v33
    %154 = vmatpush.msra.mxu0 %v32
    %155 = vmatpush.msra.mxu0 %v31
    %156 = vmatpush.msra.mxu0 %v30
    %157 = vmatpush.msra.mxu0 %v29
    %158 = vmatpush.msra.mxu0 %v28
    %159 = vmatpush.msra.mxu0 %v27
    %160 = vmatpush.msra.mxu0 %v26
    %161 = vmatpush.msra.mxu0 %v25
    %162 = vmatpush.msra.mxu0 %v24
    %163 = vmatpush.msra.mxu0 %v23
    %164 = vmatmul.f32.gmra.mxu0 %v132
    %v165 = vpop.f32.mrf.mxu0
    %v166 = vadd.f32 %v125, %v165
    %167 = vdwg.mxu0
    %168 = vmatpush.msra.mxu0 %v54
    %169 = vmatpush.msra.mxu0 %v53
    %170 = vmatpush.msra.mxu0 %v52
    %171 = vmatpush.msra.mxu0 %v51
    %172 = vmatpush.msra.mxu0 %v50
    %173 = vmatpush.msra.mxu0 %v49
    %174 = vmatpush.msra.mxu0 %v48
    %175 = vmatpush.msra.mxu0 %v47
    %176 = vmatpush.msra.mxu0 %v46
    %177 = vmatpush.msra.mxu0 %v45
    %178 = vmatpush.msra.mxu0 %v44
    %179 = vmatpush.msra.mxu0 %v43
    %180 = vmatpush.msra.mxu0 %v42
    %181 = vmatpush.msra.mxu0 %v41
    %182 = vmatpush.msra.mxu0 %v40
    %183 = vmatpush.msra.mxu0 %v39
    %184 = vmatmul.f32.gmra.mxu0 %v133
    %v185 = vpop.f32.mrf.mxu0
    %v186 = vadd.f32 %v166, %v185
    %187 = vdwg.mxu0
    %188 = vmatpush.msra.mxu0 %v70
    %189 = vmatpush.msra.mxu0 %v69
    %190 = vmatpush.msra.mxu0 %v68
    %191 = vmatpush.msra.mxu0 %v67
    %192 = vmatpush.msra.mxu0 %v66
    %193 = vmatpush.msra.mxu0 %v65
    %194 = vmatpush.msra.mxu0 %v64
    %195 = vmatpush.msra.mxu0 %v63
    %196 = vmatpush.msra.mxu0 %v62
    %197 = vmatpush.msra.mxu0 %v61
    %198 = vmatpush.msra.mxu0 %v60
    %199 = vmatpush.msra.mxu0 %v59
    %200 = vmatpush.msra.mxu0 %v58
    %201 = vmatpush.msra.mxu0 %v57
    %202 = vmatpush.msra.mxu0 %v56
    %203 = vmatpush.msra.mxu0 %v55
    %204 = vmatmul.f32.gmra.mxu0 %v134
    %v205 = vpop.f32.mrf.mxu0
    %v206 = vadd.f32 %v186, %v205
    %207 = vdwg.mxu0
    %208 = vmatpush.msra.mxu0 %v86
    %209 = vmatpush.msra.mxu0 %v85
    %210 = vmatpush.msra.mxu0 %v84
    %211 = vmatpush.msra.mxu0 %v83
    %212 = vmatpush.msra.mxu0 %v82
    %213 = vmatpush.msra.mxu0 %v81
    %214 = vmatpush.msra.mxu0 %v80
    %215 = vmatpush.msra.mxu0 %v79
    %216 = vmatpush.msra.mxu0 %v78
    %217 = vmatpush.msra.mxu0 %v77
    %218 = vmatpush.msra.mxu0 %v76
    %219 = vmatpush.msra.mxu0 %v75
    %220 = vmatpush.msra.mxu0 %v74
    %221 = vmatpush.msra.mxu0 %v73
    %222 = vmatpush.msra.mxu0 %v72
    %223 = vmatpush.msra.mxu0 %v71
    %224 = vmatmul.f32.gmra.mxu0 %v135
    %v225 = vpop.f32.mrf.mxu0
    %v226 = vadd.f32 %v206, %v225
    %227 = vdwg.mxu0
    %228 = vmatpush.msra.mxu0 %v102
    %229 = vmatpush.msra.mxu0 %v101
    %230 = vmatpush.msra.mxu0 %v100
    %231 = vmatpush.msra.mxu0 %v99
    %232 = vmatpush.msra.mxu0 %v98
    %233 = vmatpush.msra.mxu0 %v97
    %234 = vmatpush.msra.mxu0 %v96
    %235 = vmatpush.msra.mxu0 %v95
    %236 = vmatpush.msra.mxu0 %v94
    %237 = vmatpush.msra.mxu0 %v93
    %238 = vmatpush.msra.mxu0 %v92
    %239 = vmatpush.msra.mxu0 %v91
    %240 = vmatpush.msra.mxu0 %v90
    %241 = vmatpush.msra.mxu0 %v89
    %242 = vmatpush.msra.mxu0 %v88
    %243 = vmatpush.msra.mxu0 %v87
    %244 = vmatmul.f32.gmra.mxu0 %v136
    %v245 = vpop.f32.mrf.mxu0
    %v246 = vadd.f32 %v226, %v245
    %247 = vdwg.mxu0
    %248 = vmatpush.msra.mxu0 %v118
    %249 = vmatpush.msra.mxu0 %v117
    %250 = vmatpush.msra.mxu0 %v116
    %251 = vmatpush.msra.mxu0 %v115
    %252 = vmatpush.msra.mxu0 %v114
    %253 = vmatpush.msra.mxu0 %v113
    %254 = vmatpush.msra.mxu0 %v112
    %255 = vmatpush.msra.mxu0 %v111
    %256 = vmatpush.msra.mxu0 %v110
    %257 = vmatpush.msra.mxu0 %v109
    %258 = vmatpush.msra.mxu0 %v108
    %259 = vmatpush.msra.mxu0 %v107
    %260 = vmatpush.msra.mxu0 %v106
    %261 = vmatpush.msra.mxu0 %v105
    %262 = vmatpush.msra.mxu0 %v104
    %263 = vmatpush.msra.mxu0 %v103
    %264 = vmatmul.f32.gmra.mxu0 %v137
    %v265 = vpop.f32.mrf.mxu0
    %v266 = vadd.f32 %v246, %v265
    %267 = vdwg.mxu0
    %268 = vmatpush.msra.mxu0 0.0
    %269 = vmatpush.msra.mxu0 0.0
    %270 = vmatpush.msra.mxu0 0.0
    %271 = vmatpush.msra.mxu0 0.0
    %272 = vmatpush.msra.mxu0 0.0
    %273 = vmatpush.msra.mxu0 0.0
    %274 = vmatpush.msra.mxu0 0.0
    %275 = vmatpush.msra.mxu0 0.0
    %276 = vmatpush.msra.mxu0 0.0
    %277 = vmatpush.msra.mxu0 0.0
    %278 = vmatpush.msra.mxu0 0.0
    %279 = vmatpush.msra.mxu0 0.0
    %280 = vmatpush.msra.mxu0 %v122
    %281 = vmatpush.msra.mxu0 %v121
    %282 = vmatpush.msra.mxu0 %v120
    %283 = vmatpush.msra.mxu0 %v119
    %284 = vmatmul.f32.gmra.mxu0 %v146
    %v285 = vpop.f32.mrf.mxu0
    %v286 = vadd.f32 %v266, %v285
    %287 = vdwg.mxu0
    %v288 = vmax.f32 %v286, 0.0
    %v289 = vld [vmem:[%s3] sm:$0xff]
    %v290 = vld [vmem:[%s3 + $0x8] sm:$0xff]
    %v291 = vld [vmem:[%s3 + $0x10] sm:$0xff]
    %v292 = vld [vmem:[%s3 + $0x18] sm:$0xff]
    %v293 = vld [vmem:[%s3 + $0x20] sm:$0xff]
    %v294 = vld [vmem:[%s3 + $0x28] sm:$0xff]
    %v295 = vld [vmem:[%s3 + $0x30] sm:$0xff]
    %v296 = vld [vmem:[%s3 + $0x38] sm:$0xff]
    %v297 = vld [vmem:[%s3 + $0x40] sm:$0xff]
    %v298 = vld [vmem:[%s3 + $0x48] sm:$0xff]
    %v299 = vld [vmem:[%s3 + $0x50] sm:$0xff]
    %v300 = vld [vmem:[%s3 + $0x58] sm:$0xff]
    %v301 = vld [vmem:[%s3 + $0x60] sm:$0xff]
    %v302 = vld [vmem:[%s3 + $0x68] sm:$0xff]
    %v303 = vld [vmem:[%s3 + $0x70] sm:$0xff]
    %v304 = vld [vmem:[%s3 + $0x78] sm:$0xff]
    %v305 = vld [vmem:[%s4] sm:$0x1]
    %v307 = vperm.slane %v305, 0
    %309 = vmatpush.msra.mxu0 %v304
    %310 = vmatpush.msra.mxu0 %v303
    %311 = vmatpush.msra.mxu0 %v302
    %312 = vmatpush.msra.mxu0 %v301
    %313 = vmatpush.msra.mxu0 %v300
    %314 = vmatpush.msra.mxu0 %v299
    %315 = vmatpush.msra.mxu0 %v298
    %316 = vmatpush.msra.mxu0 %v297
    %317 = vmatpush.msra.mxu0 %v296
    %318 = vmatpush.msra.mxu0 %v295
    %319 = vmatpush.msra.mxu0 %v294
    %320 = vmatpush.msra.mxu0 %v293
    %321 = vmatpush.msra.mxu0 %v292
    %322 = vmatpush.msra.mxu0 %v291
    %323 = vmatpush.msra.mxu0 %v290
    %324 = vmatpush.msra.mxu0 %v289
    %325 = vmatmul.f32.gmra.mxu0 %v288
    %v326 = vpop.f32.mrf.mxu0
    %v327 = vadd.f32 %v307, %v326
    %328 = vdwg.mxu0
    %vm329 = vcmask 74752
    %330 = vst.msk [vmem:[#allocation2] sm:$0x3] %vm329, %v327
    // Predicated region
    $region22: #{cnn_forward.5} parent=1 // pred_check
      _
    $region23: #{cnn_forward.5} parent=1 // pred_check_branch
      %332 = sbr.rel (0) target = $region25
    $region24: #{cnn_forward.5} parent=1 // pred_region
      %334 = vsyncadd [#allocation3], 0
      %s336 = sshll.u32 [#allocation2], 4
      %s337 = int_to_ptr.vmem [resolvable:$true] %s336
      %s338 = sshll.u32 %s5, 4
      %s339 = int_to_ptr.hbm [resolvable:$true] %s338
      %341 = dma.vmem_to_hbm [thread:$0]  %s337, 32, %s339, [#allocation3]
    $region25: #{cnn_forward.5} parent=1 // pred_fallthru
      _
    // Predicated region
    $region26: #{cnn_forward.5} parent=1 // pred_check
      _
    $region27: #{cnn_forward.5} parent=1 // pred_check_branch
      %343 = sbr.rel (0) target = $region29
    $region28: #{cnn_forward.5} parent=1 // pred_region
      %345 = dma.done [#allocation3], 32
    $region29: #{cnn_forward.5} parent=1 // pred_fallthru
      _
    %346 = vsyncpa [#allocation3], 1

</llo_original>
